<compile_context>
chip_gen: v7x
topology: tpu7x:2x2x1
jax: 0.10.0
libtpu: 0.0.40
codegen_flags: <defaults>
</compile_context>

<pallas_src>
import math
import numpy as np
import jax
import jax.numpy as jnp
from jax.experimental import pallas as pl
from jax.experimental.pallas import tpu as pltpu

# ---- problem sizes (module defaults) ----
B = 2            # batch
CIN = 6          # input_channels
L = 16           # sequence length
NF = 16          # num_features
E = NF * 3       # 48, embed size (mid conv channels / attention embed)
NCLS = 5         # num_classes
BL = B * L       # 32 working rows (batch * seq)
EPS = 1e-5       # BatchNorm eps
assert B == 2    # the batch-swap attention softmax below is specialized to B=2

# ---- packed parameter slab layout: (R_TOTAL, 144) f32, all offsets 8-aligned ----
W_LANES = 3 * E  # 144
R_W1 = 0         # conv1 taps: tap k at rows R_W1+8k .. +8k+CIN-1, cols :NF
R_W2 = 24        # conv2 taps: tap k at rows R_W2+16k .. R_W2+16(k+1)-1, cols :E
R_QKV = 72       # fused QKV weight (E, 3E); 1/sqrt(E) folded into the Q part
R_FC = 120       # fc weight (E, NCLS)
R_PRV = 168      # prev-shift matrix (BL, BL): picks row l-1, zero at seq start
R_NXT = 200      # next-shift matrix (BL, BL): picks row l+1, zero at seq end
R_SWP = 232      # batch-swap matrix (BL, BL): other batch's row, same l
R_POOL = 264     # mean-pool matrix (B, BL) with 1/L entries
R_VEC = 272      # one vector per row: b1, b2, gamma, beta, bqkv, bfc
R_TOTAL = 280


def model3_kernel(x_ref, w_ref, out_ref):
    f32 = jnp.float32
    dot = lambda a, b: jnp.dot(a, b, preferred_element_type=f32)

    x = x_ref[...]                                        # (BL, CIN)

    # structural matrices (sequence shifts / batch swap / mean pool)
    prev_m = w_ref[R_PRV:R_PRV + BL, :BL]
    next_m = w_ref[R_NXT:R_NXT + BL, :BL]
    swap_m = w_ref[R_SWP:R_SWP + BL, :BL]
    pool_m = w_ref[R_POOL:R_POOL + B, :BL]

    # per-channel vectors as 2-D (1, n) slices (no 1-D + [None, :] relayouts)
    b1 = w_ref[R_VEC + 0:R_VEC + 1, :NF]
    b2 = w_ref[R_VEC + 1:R_VEC + 2, :E]
    gamma = w_ref[R_VEC + 2:R_VEC + 3, :E]
    beta = w_ref[R_VEC + 3:R_VEC + 4, :E]
    bqkv = w_ref[R_VEC + 4:R_VEC + 5, :]
    bfc = w_ref[R_VEC + 5:R_VEC + 6, :NCLS]

    # ---- initial_conv: Conv1d(CIN -> NF, k=3, pad=1) + ReLU ------------------
    x_prev = dot(prev_m, x)                               # row l-1 (0 at l == 0)
    x_next = dot(next_m, x)                               # row l+1 (0 at l == L-1)
    h1 = (dot(x_prev, w_ref[R_W1:R_W1 + CIN, :NF]) +
          dot(x, w_ref[R_W1 + 8:R_W1 + 8 + CIN, :NF]) +
          dot(x_next, w_ref[R_W1 + 16:R_W1 + 16 + CIN, :NF]) + b1)
    h1 = jnp.maximum(h1, 0.0)                             # (BL, NF)

    # ---- mid_conv: Conv1d(NF -> E, k=3, pad=1) -------------------------------
    h1_prev = dot(prev_m, h1)
    h1_next = dot(next_m, h1)
    h2 = (dot(h1_prev, w_ref[R_W2:R_W2 + NF, :E]) +
          dot(h1, w_ref[R_W2 + NF:R_W2 + 2 * NF, :E]) +
          dot(h1_next, w_ref[R_W2 + 2 * NF:R_W2 + 3 * NF, :E]) + b2)  # (BL, E)

    # ---- BatchNorm1d (training-mode batch stats over B*L, biased variance) ---
    mean = jnp.mean(h2, axis=0, keepdims=True)
    var = jnp.mean((h2 - mean) ** 2, axis=0, keepdims=True)
    h2 = (h2 - mean) * jax.lax.rsqrt(var + EPS) * gamma + beta

    # ---- SelfAttention over the batch axis (B == 2) --------------------------
    qkv = dot(h2, w_ref[R_QKV:R_QKV + E, :]) + bqkv       # (BL, 3E); scale folded into Q
    q = qkv[:, 0:E]
    k = qkv[:, E:2 * E]
    v = qkv[:, 2 * E:3 * E]
    k_sw = dot(swap_m, k)                                 # the other batch's keys, same l
    v_sw = dot(swap_m, v)
    s_same = jnp.sum(q * k, axis=1, keepdims=True)        # (BL, 1): score vs own batch
    s_cross = jnp.sum(q * k_sw, axis=1, keepdims=True)    # (BL, 1): score vs other batch
    m = jnp.maximum(s_same, s_cross)
    e_same = jnp.exp(s_same - m)
    e_cross = jnp.exp(s_cross - m)
    inv = pl.reciprocal(e_same + e_cross, approx=True)    # softmax denom on the EUP slot
    attn_out = (e_same * inv) * v + (e_cross * inv) * v_sw  # (BL, E)

    # ---- mean over sequence (1/L folded into pool_m) + fc_layer --------------
    pooled = dot(pool_m, attn_out)                        # (B, E)
    y = dot(pooled, w_ref[R_FC:R_FC + E, :NCLS]) + bfc    # (B, NCLS)
    out_ref[...] = y.astype(out_ref.dtype)


@jax.jit
def model3_forward(x_ncl, slab):
    # x: (B, CIN, L) -> flat channel-last rows (B*L, CIN); im2col happens in-kernel.
    x_rows = jnp.transpose(x_ncl, (0, 2, 1)).reshape(BL, CIN).astype(jnp.float32)
    return pl.pallas_call(
        model3_kernel,
        out_shape=jax.ShapeDtypeStruct((B, NCLS), jnp.float32),
        in_specs=[pl.BlockSpec(memory_space=pltpu.MemorySpace.VMEM)] * 2,
        out_specs=pl.BlockSpec(memory_space=pltpu.MemorySpace.VMEM),
    )(x_rows, slab)


# ---------- deterministic parameter init (xavier_uniform weights, zero biases) ----------
def _xavier(key, shape, fan_in, fan_out):
    bound = math.sqrt(6.0 / (fan_in + fan_out))
    return jax.random.uniform(key, shape, jnp.float32, -bound, bound)


def init_params(key):
    ks = jax.random.split(key, 6)
    # torch Conv1d weight: (out, in, k) -> kernel layout (k, in, out)
    w1_t = _xavier(ks[0], (NF, CIN, 3), CIN * 3, NF * 3)
    w2_t = _xavier(ks[1], (E, NF, 3), NF * 3, E * 3)
    w1 = jnp.transpose(w1_t, (2, 1, 0))     # (3, CIN, NF)
    w2 = jnp.transpose(w2_t, (2, 1, 0))     # (3, NF, E)
    b1 = jnp.zeros((NF,), jnp.float32)
    b2 = jnp.zeros((E,), jnp.float32)
    gamma = jnp.ones((E,), jnp.float32)
    beta = jnp.zeros((E,), jnp.float32)
    # torch Linear weight: (out, in); math below uses y = x @ W.T
    wq = _xavier(ks[2], (E, E), E, E).T
    wk = _xavier(ks[3], (E, E), E, E).T
    wv = _xavier(ks[4], (E, E), E, E).T
    bq = jnp.zeros((E,), jnp.float32)
    bk = jnp.zeros((E,), jnp.float32)
    bv = jnp.zeros((E,), jnp.float32)
    wfc = _xavier(ks[5], (NCLS, E), E, NCLS).T   # (E, NCLS)
    bfc = jnp.zeros((NCLS,), jnp.float32)
    return (w1, b1, w2, b2, gamma, beta, wq, bq, wk, bk, wv, bv, wfc, bfc)


def pack_params(params):
    """One-time repack of torch-layout params into the single kernel slab."""
    w1, b1, w2, b2, gamma, beta, wq, bq, wk, bk, wv, bv, wfc, bfc = params
    w1 = np.asarray(w1)
    w2 = np.asarray(w2)
    inv_sqrt_e = 1.0 / math.sqrt(float(E))

    slab = np.zeros((R_TOTAL, W_LANES), np.float32)
    # conv taps (im2col weight slices), one 8/16-row-aligned block per tap
    for k in range(3):
        slab[R_W1 + 8 * k:R_W1 + 8 * k + CIN, :NF] = w1[k]
        slab[R_W2 + NF * k:R_W2 + NF * (k + 1), :E] = w2[k]
    # fused QKV (scale folded into the Q columns) and fc
    slab[R_QKV:R_QKV + E, 0:E] = np.asarray(wq) * inv_sqrt_e
    slab[R_QKV:R_QKV + E, E:2 * E] = np.asarray(wk)
    slab[R_QKV:R_QKV + E, 2 * E:3 * E] = np.asarray(wv)
    slab[R_FC:R_FC + E, :NCLS] = np.asarray(wfc)

    # structural matrices: sequence prev/next shifts (conv padding baked in),
    # batch swap (B == 2), and mean-over-sequence pooling with 1/L folded in.
    r = np.arange(BL)
    li = r % L
    prev_m = np.zeros((BL, BL), np.float32)
    prev_m[r[li > 0], r[li > 0] - 1] = 1.0
    next_m = np.zeros((BL, BL), np.float32)
    next_m[r[li < L - 1], r[li < L - 1] + 1] = 1.0
    swap_m = np.zeros((BL, BL), np.float32)
    swap_m[r, (r + L) % BL] = 1.0
    pool_m = np.zeros((B, BL), np.float32)
    for b in range(B):
        pool_m[b, b * L:(b + 1) * L] = 1.0 / L
    slab[R_PRV:R_PRV + BL, :BL] = prev_m
    slab[R_NXT:R_NXT + BL, :BL] = next_m
    slab[R_SWP:R_SWP + BL, :BL] = swap_m
    slab[R_POOL:R_POOL + B, :BL] = pool_m

    # bias / affine vectors, one per row
    slab[R_VEC + 0, :NF] = np.asarray(b1)
    slab[R_VEC + 1, :E] = np.asarray(b2)
    slab[R_VEC + 2, :E] = np.asarray(gamma)
    slab[R_VEC + 3, :E] = np.asarray(beta)
    slab[R_VEC + 4, 0:E] = np.asarray(bq) * inv_sqrt_e
    slab[R_VEC + 4, E:2 * E] = np.asarray(bk)
    slab[R_VEC + 4, 2 * E:3 * E] = np.asarray(bv)
    slab[R_VEC + 5, :NCLS] = np.asarray(bfc)
    return jnp.asarray(slab)


# ---------- pure-JAX reference (mirrors the torch forward) ----------
def reference_forward(x_ncl, params):
    w1, b1, w2, b2, gamma, beta, wq, bq, wk, bk, wv, bv, wfc, bfc = params
    x = jnp.transpose(x_ncl, (0, 2, 1))
    xp = jnp.pad(x, ((0, 0), (1, 1), (0, 0)))
    h1 = b1[None, None, :] + sum(
        jnp.einsum('blc,cf->blf', xp[:, k:k + L, :], w1[k]) for k in range(3))
    h1 = jnp.maximum(h1, 0.0)
    h1p = jnp.pad(h1, ((0, 0), (1, 1), (0, 0)))
    h2 = b2[None, None, :] + sum(
        jnp.einsum('blf,fe->ble', h1p[:, k:k + L, :], w2[k]) for k in range(3))
    mean = jnp.mean(h2, axis=(0, 1), keepdims=True)
    var = jnp.mean((h2 - mean) ** 2, axis=(0, 1), keepdims=True)
    h2 = gamma * (h2 - mean) / jnp.sqrt(var + EPS) + beta
    xa = jnp.transpose(h2, (1, 0, 2))                 # (L, B, E)
    q = xa @ wq + bq
    k = xa @ wk + bk
    v = xa @ wv + bv
    s = jnp.einsum('lbe,lce->lbc', q, k) / jnp.sqrt(jnp.float32(E))
    a = jax.nn.softmax(s, axis=-1)
    o = jnp.einsum('lbc,lce->lbe', a, v)              # (L, B, E)
    pooled = jnp.mean(jnp.transpose(o, (1, 2, 0)), axis=2)   # (B, E)
    return pooled @ wfc + bfc


if __name__ == "__main__":
    root = jax.random.PRNGKey(0)
    kx, kp = jax.random.split(root)
    x = jax.random.normal(kx, (B, CIN, L), jnp.float32)   # NCL, like torch Conv1d input
    params = init_params(kp)
    slab = pack_params(params)

    out = model3_forward(x, slab)
    jax.block_until_ready(out)

    ref = reference_forward(x, params)
    assert out.shape == (B, NCLS)
    assert np.allclose(np.asarray(out), np.asarray(ref), rtol=2e-3, atol=2e-3), (out, ref)
    print("KERNEL_OK")
</pallas_src>

<mosaic_0001>
module attributes {stable_mosaic.version = 11 : i64} {
  func.func @model3_kernel(%arg0: memref<32x6xf32, #tpu.memory_space<vmem>>, %arg1: memref<280x144xf32, #tpu.memory_space<vmem>>, %arg2: memref<2x5xf32, #tpu.memory_space<vmem>>) attributes {dimension_semantics = [], scalar_prefetch = 0 : i64, scratch_operands = 0 : i64, tpu.core_type = #tpu.core_type<tc>} {
    %c0 = arith.constant 0 : index
    %c0_0 = arith.constant 0 : index
    %0 = vector.load %arg0[%c0, %c0_0] : memref<32x6xf32, #tpu.memory_space<vmem>>, vector<32x6xf32>
    %c168 = arith.constant 168 : index
    %c0_1 = arith.constant 0 : index
    %1 = vector.load %arg1[%c168, %c0_1] : memref<280x144xf32, #tpu.memory_space<vmem>>, vector<32x32xf32>
    %c200 = arith.constant 200 : index
    %c0_2 = arith.constant 0 : index
    %2 = vector.load %arg1[%c200, %c0_2] : memref<280x144xf32, #tpu.memory_space<vmem>>, vector<32x32xf32>
    %c232 = arith.constant 232 : index
    %c0_3 = arith.constant 0 : index
    %3 = vector.load %arg1[%c232, %c0_3] : memref<280x144xf32, #tpu.memory_space<vmem>>, vector<32x32xf32>
    %c264 = arith.constant 264 : index
    %c0_4 = arith.constant 0 : index
    %4 = vector.load %arg1[%c264, %c0_4] : memref<280x144xf32, #tpu.memory_space<vmem>>, vector<2x32xf32>
    %c272 = arith.constant 272 : index
    %c0_5 = arith.constant 0 : index
    %5 = vector.load %arg1[%c272, %c0_5] : memref<280x144xf32, #tpu.memory_space<vmem>>, vector<1x16xf32>
    %c273 = arith.constant 273 : index
    %c0_6 = arith.constant 0 : index
    %6 = vector.load %arg1[%c273, %c0_6] : memref<280x144xf32, #tpu.memory_space<vmem>>, vector<1x48xf32>
    %c274 = arith.constant 274 : index
    %c0_7 = arith.constant 0 : index
    %7 = vector.load %arg1[%c274, %c0_7] : memref<280x144xf32, #tpu.memory_space<vmem>>, vector<1x48xf32>
    %c275 = arith.constant 275 : index
    %c0_8 = arith.constant 0 : index
    %8 = vector.load %arg1[%c275, %c0_8] : memref<280x144xf32, #tpu.memory_space<vmem>>, vector<1x48xf32>
    %c276 = arith.constant 276 : index
    %c0_9 = arith.constant 0 : index
    %9 = vector.load %arg1[%c276, %c0_9] : memref<280x144xf32, #tpu.memory_space<vmem>>, vector<1x144xf32>
    %c277 = arith.constant 277 : index
    %c0_10 = arith.constant 0 : index
    %10 = vector.load %arg1[%c277, %c0_10] : memref<280x144xf32, #tpu.memory_space<vmem>>, vector<1x5xf32>
    %cst = arith.constant dense<0.000000e+00> : vector<32x6xf32>
    %11 = tpu.matmul %1, %0, %cst {dimension_numbers = #tpu.dot_dimension_numbers<[1], [0], [0], [1], [0, 0, 1, 1], [], []>} : vector<32x32xf32>, vector<32x6xf32>, vector<32x6xf32> -> vector<32x6xf32>
    %cst_11 = arith.constant dense<0.000000e+00> : vector<32x6xf32>
    %12 = tpu.matmul %2, %0, %cst_11 {dimension_numbers = #tpu.dot_dimension_numbers<[1], [0], [0], [1], [0, 0, 1, 1], [], []>} : vector<32x32xf32>, vector<32x6xf32>, vector<32x6xf32> -> vector<32x6xf32>
    %c0_12 = arith.constant 0 : index
    %c0_13 = arith.constant 0 : index
    %13 = vector.load %arg1[%c0_12, %c0_13] : memref<280x144xf32, #tpu.memory_space<vmem>>, vector<6x16xf32>
    %cst_14 = arith.constant dense<0.000000e+00> : vector<32x16xf32>
    %14 = tpu.matmul %11, %13, %cst_14 {dimension_numbers = #tpu.dot_dimension_numbers<[1], [0], [0], [1], [0, 0, 1, 1], [], []>} : vector<32x6xf32>, vector<6x16xf32>, vector<32x16xf32> -> vector<32x16xf32>
    %c8 = arith.constant 8 : index
    %c0_15 = arith.constant 0 : index
    %15 = vector.load %arg1[%c8, %c0_15] : memref<280x144xf32, #tpu.memory_space<vmem>>, vector<6x16xf32>
    %cst_16 = arith.constant dense<0.000000e+00> : vector<32x16xf32>
    %16 = tpu.matmul %0, %15, %cst_16 {dimension_numbers = #tpu.dot_dimension_numbers<[1], [0], [0], [1], [0, 0, 1, 1], [], []>} : vector<32x6xf32>, vector<6x16xf32>, vector<32x16xf32> -> vector<32x16xf32>
    %17 = arith.addf %14, %16 : vector<32x16xf32>
    %c16 = arith.constant 16 : index
    %c0_17 = arith.constant 0 : index
    %18 = vector.load %arg1[%c16, %c0_17] : memref<280x144xf32, #tpu.memory_space<vmem>>, vector<6x16xf32>
    %cst_18 = arith.constant dense<0.000000e+00> : vector<32x16xf32>
    %19 = tpu.matmul %12, %18, %cst_18 {dimension_numbers = #tpu.dot_dimension_numbers<[1], [0], [0], [1], [0, 0, 1, 1], [], []>} : vector<32x6xf32>, vector<6x16xf32>, vector<32x16xf32> -> vector<32x16xf32>
    %20 = arith.addf %17, %19 : vector<32x16xf32>
    %21 = vector.broadcast %5 : vector<1x16xf32> to vector<32x16xf32>
    %22 = arith.addf %20, %21 : vector<32x16xf32>
    %cst_19 = arith.constant 0.000000e+00 : f32
    %23 = vector.broadcast %cst_19 : f32 to vector<32x16xf32>
    %24 = arith.maximumf %22, %23 : vector<32x16xf32>
    %cst_20 = arith.constant dense<0.000000e+00> : vector<32x16xf32>
    %25 = tpu.matmul %1, %24, %cst_20 {dimension_numbers = #tpu.dot_dimension_numbers<[1], [0], [0], [1], [0, 0, 1, 1], [], []>} : vector<32x32xf32>, vector<32x16xf32>, vector<32x16xf32> -> vector<32x16xf32>
    %cst_21 = arith.constant dense<0.000000e+00> : vector<32x16xf32>
    %26 = tpu.matmul %2, %24, %cst_21 {dimension_numbers = #tpu.dot_dimension_numbers<[1], [0], [0], [1], [0, 0, 1, 1], [], []>} : vector<32x32xf32>, vector<32x16xf32>, vector<32x16xf32> -> vector<32x16xf32>
    %c24 = arith.constant 24 : index
    %c0_22 = arith.constant 0 : index
    %27 = vector.load %arg1[%c24, %c0_22] : memref<280x144xf32, #tpu.memory_space<vmem>>, vector<16x48xf32>
    %cst_23 = arith.constant dense<0.000000e+00> : vector<32x48xf32>
    %28 = tpu.matmul %25, %27, %cst_23 {dimension_numbers = #tpu.dot_dimension_numbers<[1], [0], [0], [1], [0, 0, 1, 1], [], []>} : vector<32x16xf32>, vector<16x48xf32>, vector<32x48xf32> -> vector<32x48xf32>
    %c40 = arith.constant 40 : index
    %c0_24 = arith.constant 0 : index
    %29 = vector.load %arg1[%c40, %c0_24] : memref<280x144xf32, #tpu.memory_space<vmem>>, vector<16x48xf32>
    %cst_25 = arith.constant dense<0.000000e+00> : vector<32x48xf32>
    %30 = tpu.matmul %24, %29, %cst_25 {dimension_numbers = #tpu.dot_dimension_numbers<[1], [0], [0], [1], [0, 0, 1, 1], [], []>} : vector<32x16xf32>, vector<16x48xf32>, vector<32x48xf32> -> vector<32x48xf32>
    %31 = arith.addf %28, %30 : vector<32x48xf32>
    %c56 = arith.constant 56 : index
    %c0_26 = arith.constant 0 : index
    %32 = vector.load %arg1[%c56, %c0_26] : memref<280x144xf32, #tpu.memory_space<vmem>>, vector<16x48xf32>
    %cst_27 = arith.constant dense<0.000000e+00> : vector<32x48xf32>
    %33 = tpu.matmul %26, %32, %cst_27 {dimension_numbers = #tpu.dot_dimension_numbers<[1], [0], [0], [1], [0, 0, 1, 1], [], []>} : vector<32x16xf32>, vector<16x48xf32>, vector<32x48xf32> -> vector<32x48xf32>
    %34 = arith.addf %31, %33 : vector<32x48xf32>
    %35 = vector.broadcast %6 : vector<1x48xf32> to vector<32x48xf32>
    %36 = arith.addf %34, %35 : vector<32x48xf32>
    %cst_28 = arith.constant dense<0.000000e+00> : vector<48xf32>
    %37 = vector.multi_reduction <add>, %36, %cst_28 [0] : vector<32x48xf32> to vector<48xf32>
    %38 = vector.shape_cast %37 : vector<48xf32> to vector<1x48xf32>
    %cst_29 = arith.constant 3.200000e+01 : f32
    %39 = vector.broadcast %cst_29 : f32 to vector<1x48xf32>
    %40 = arith.divf %38, %39 : vector<1x48xf32>
    %41 = vector.broadcast %40 : vector<1x48xf32> to vector<32x48xf32>
    %42 = arith.subf %36, %41 : vector<32x48xf32>
    %43 = arith.mulf %42, %42 : vector<32x48xf32>
    %cst_30 = arith.constant dense<0.000000e+00> : vector<48xf32>
    %44 = vector.multi_reduction <add>, %43, %cst_30 [0] : vector<32x48xf32> to vector<48xf32>
    %45 = vector.shape_cast %44 : vector<48xf32> to vector<1x48xf32>
    %cst_31 = arith.constant 3.200000e+01 : f32
    %46 = vector.broadcast %cst_31 : f32 to vector<1x48xf32>
    %47 = arith.divf %45, %46 : vector<1x48xf32>
    %48 = vector.broadcast %40 : vector<1x48xf32> to vector<32x48xf32>
    %49 = arith.subf %36, %48 : vector<32x48xf32>
    %cst_32 = arith.constant 9.99999974E-6 : f32
    %50 = vector.broadcast %cst_32 : f32 to vector<1x48xf32>
    %51 = arith.addf %47, %50 : vector<1x48xf32>
    %52 = math.rsqrt %51 : vector<1x48xf32>
    %53 = vector.broadcast %52 : vector<1x48xf32> to vector<32x48xf32>
    %54 = arith.mulf %49, %53 : vector<32x48xf32>
    %55 = vector.broadcast %7 : vector<1x48xf32> to vector<32x48xf32>
    %56 = arith.mulf %54, %55 : vector<32x48xf32>
    %57 = vector.broadcast %8 : vector<1x48xf32> to vector<32x48xf32>
    %58 = arith.addf %56, %57 : vector<32x48xf32>
    %c72 = arith.constant 72 : index
    %c0_33 = arith.constant 0 : index
    %59 = vector.load %arg1[%c72, %c0_33] : memref<280x144xf32, #tpu.memory_space<vmem>>, vector<48x144xf32>
    %cst_34 = arith.constant dense<0.000000e+00> : vector<32x144xf32>
    %60 = tpu.matmul %58, %59, %cst_34 {dimension_numbers = #tpu.dot_dimension_numbers<[1], [0], [0], [1], [0, 0, 1, 1], [], []>} : vector<32x48xf32>, vector<48x144xf32>, vector<32x144xf32> -> vector<32x144xf32>
    %61 = vector.broadcast %9 : vector<1x144xf32> to vector<32x144xf32>
    %62 = arith.addf %60, %61 : vector<32x144xf32>
    %63 = vector.extract_strided_slice %62 {offsets = [0, 0], sizes = [32, 48], strides = [1, 1]} : vector<32x144xf32> to vector<32x48xf32>
    %64 = vector.extract_strided_slice %62 {offsets = [0, 48], sizes = [32, 48], strides = [1, 1]} : vector<32x144xf32> to vector<32x48xf32>
    %65 = vector.extract_strided_slice %62 {offsets = [0, 96], sizes = [32, 48], strides = [1, 1]} : vector<32x144xf32> to vector<32x48xf32>
    %cst_35 = arith.constant dense<0.000000e+00> : vector<32x48xf32>
    %66 = tpu.matmul %3, %64, %cst_35 {dimension_numbers = #tpu.dot_dimension_numbers<[1], [0], [0], [1], [0, 0, 1, 1], [], []>} : vector<32x32xf32>, vector<32x48xf32>, vector<32x48xf32> -> vector<32x48xf32>
    %cst_36 = arith.constant dense<0.000000e+00> : vector<32x48xf32>
    %67 = tpu.matmul %3, %65, %cst_36 {dimension_numbers = #tpu.dot_dimension_numbers<[1], [0], [0], [1], [0, 0, 1, 1], [], []>} : vector<32x32xf32>, vector<32x48xf32>, vector<32x48xf32> -> vector<32x48xf32>
    %68 = arith.mulf %63, %64 : vector<32x48xf32>
    %cst_37 = arith.constant dense<0.000000e+00> : vector<32xf32>
    %69 = vector.multi_reduction <add>, %68, %cst_37 [1] : vector<32x48xf32> to vector<32xf32>
    %70 = vector.shape_cast %69 : vector<32xf32> to vector<32x1xf32>
    %71 = arith.mulf %63, %66 : vector<32x48xf32>
    %cst_38 = arith.constant dense<0.000000e+00> : vector<32xf32>
    %72 = vector.multi_reduction <add>, %71, %cst_38 [1] : vector<32x48xf32> to vector<32xf32>
    %73 = vector.shape_cast %72 : vector<32xf32> to vector<32x1xf32>
    %74 = arith.maximumf %70, %73 : vector<32x1xf32>
    %75 = arith.subf %70, %74 : vector<32x1xf32>
    %76 = math.exp %75 : vector<32x1xf32>
    %77 = arith.subf %73, %74 : vector<32x1xf32>
    %78 = math.exp %77 : vector<32x1xf32>
    %79 = arith.addf %76, %78 : vector<32x1xf32>
    %80 = tpu.reciprocal %79 {approx = true} : vector<32x1xf32> -> vector<32x1xf32>
    %81 = arith.mulf %76, %80 : vector<32x1xf32>
    %82 = vector.broadcast %81 : vector<32x1xf32> to vector<32x48xf32>
    %83 = arith.mulf %82, %65 : vector<32x48xf32>
    %84 = arith.mulf %78, %80 : vector<32x1xf32>
    %85 = vector.broadcast %84 : vector<32x1xf32> to vector<32x48xf32>
    %86 = arith.mulf %85, %67 : vector<32x48xf32>
    %87 = arith.addf %83, %86 : vector<32x48xf32>
    %cst_39 = arith.constant dense<0.000000e+00> : vector<2x48xf32>
    %88 = tpu.matmul %4, %87, %cst_39 {dimension_numbers = #tpu.dot_dimension_numbers<[1], [0], [0], [1], [0, 0, 1, 1], [], []>} : vector<2x32xf32>, vector<32x48xf32>, vector<2x48xf32> -> vector<2x48xf32>
    %c120 = arith.constant 120 : index
    %c0_40 = arith.constant 0 : index
    %89 = vector.load %arg1[%c120, %c0_40] : memref<280x144xf32, #tpu.memory_space<vmem>>, vector<48x5xf32>
    %cst_41 = arith.constant dense<0.000000e+00> : vector<2x5xf32>
    %90 = tpu.matmul %88, %89, %cst_41 {dimension_numbers = #tpu.dot_dimension_numbers<[1], [0], [0], [1], [0, 0, 1, 1], [], []>} : vector<2x48xf32>, vector<48x5xf32>, vector<2x5xf32> -> vector<2x5xf32>
    %91 = vector.broadcast %10 : vector<1x5xf32> to vector<2x5xf32>
    %92 = arith.addf %90, %91 : vector<2x5xf32>
    %c0_42 = arith.constant 0 : index
    %c0_43 = arith.constant 0 : index
    %93 = vector.load %arg2[%c0_42, %c0_43] : memref<2x5xf32, #tpu.memory_space<vmem>>, vector<2x5xf32>
    tpu.vector_store %arg2[%c0_42, %c0_43], %92 {strides = array<i32>} : memref<2x5xf32, #tpu.memory_space<vmem>>, vector<2x5xf32>,
    return
  }
}

</mosaic_0001>

<llo_original>
// kernel: model3_forward.1
$region0: #{model3_forward.1}
  #allocation0 [shape = 'u32[]', space=smem, size = 0x4, offset = 0x4, fixed_abs, tag = 'smem constant byte address 0x4 - core index']
  #allocation1 [shape = 'u32[144,128]{1,0:T(1,128)}', space=vmem, size = 0x12000, scoped, tag = 'internal scratch']
  %s0 = inlined_call_operand.vmem [shape: f32[32,6], index: 0, kind: input, shape index: {}]
  %s1 = inlined_call_operand.vmem [shape: f32[280,144], index: 1, kind: input, shape index: {}]
  %s2 = inlined_call_operand.hbm [shape: f32[2,5], index: 2, kind: output, shape index: {}]
  %s3 = sld [smem:[#allocation0]]
  $region18: #{model3_forward.1} parent=0
    _
  %s5 = ssub.s32 1, %s3
  %s6 = scalar_select 0, %s5, %s3
  $region1: #{model3_forward.1} parent=0
    #allocation2 [shape = 'u8[1024]{0}', space=vmem, size = 0x400, scoped, tag = 'output window, operand 0, single buffered']
    #allocation3 [shape = 's32[1]{0}', space=sflag, size = 0x4, scoped, tag = 'scoped memory for model3_forward.1']
    %7 = vsyncpa [#allocation3], 0
    // Predicated region
    $region2: #{model3_forward.1} parent=1 // pred_check
      _
    $region3: #{model3_forward.1} parent=1 // pred_check_branch
      %9 = sbr.rel (0) target = $region5
    $region4: #{model3_forward.1} parent=1 // pred_region
      _
    $region5: #{model3_forward.1} parent=1 // pred_fallthru
      _
    // Predicated region
    $region6: #{model3_forward.1} parent=1 // pred_check
      _
    $region7: #{model3_forward.1} parent=1 // pred_check_branch
      %11 = sbr.rel (0) target = $region9
    $region8: #{model3_forward.1} parent=1 // pred_region
      _
    $region9: #{model3_forward.1} parent=1 // pred_fallthru
      _
    %v12 = vld [vmem:[%s0] sm:$0xff]
    %v13 = vld [vmem:[%s0 + $0x8] sm:$0xff]
    %v14 = vld [vmem:[%s0 + $0x10] sm:$0xff]
    %v15 = vld [vmem:[%s0 + $0x18] sm:$0xff]
    %v16 = vld [vmem:[%s1 + $0x150] sm:$0xff]
    %v17 = vld [vmem:[%s1 + $0x160] sm:$0xff]
    %v18 = vld [vmem:[%s1 + $0x170] sm:$0xff]
    %v19 = vld [vmem:[%s1 + $0x180] sm:$0xff]
    %v20 = vld [vmem:[%s1 + $0x190] sm:$0xff]
    %v21 = vld [vmem:[%s1 + $0x1a0] sm:$0xff]
    %v22 = vld [vmem:[%s1 + $0x1b0] sm:$0xff]
    %v23 = vld [vmem:[%s1 + $0x1c0] sm:$0xff]
    %v24 = vld [vmem:[%s1 + $0x1d0] sm:$0xff]
    %v25 = vld [vmem:[%s1 + $0x1e0] sm:$0xff]
    %v26 = vld [vmem:[%s1 + $0x1f0] sm:$0xff]
    %v27 = vld [vmem:[%s1 + $0x200] sm:$0xff]
    %v28 = vld [vmem:[%s1 + $0x210] sm:$0x3]
    %v29 = vld [vmem:[%s1 + $0x220] ss:$0 sm:$0xff]
    %v30 = vld [vmem:[%s1 + $0x221] ss:$0 sm:$0xff]
    %v31 = vld [vmem:[%s1 + $0x222] ss:$0 sm:$0xff]
    %v32 = vld [vmem:[%s1 + $0x223] ss:$0 sm:$0xff]
    %s33 = scalar_lea.vmem %s1, 548
    %v34 = vld [vmem:[%s33] ss:$8 sm:$0x3]
    %v35 = vld [vmem:[%s1 + $0x225] ss:$0 sm:$0xff]
    %vm36 = vcmask 261120
    %v38 = vsel %vm36, %v16, 0
    %v41 = vsel %vm36, %v17, 0
    %v44 = vsel %vm36, %v18, 0
    %v47 = vsel %vm36, %v19, 0
    %49 = vmatprep.subr.mxu0 0.0
    %50 = vmatpush1.msra.mxu0 %v12
    %51 = vmatprep.subr.mxu0 0.0
    %52 = vmatpush1.msra.mxu0 %v13
    %53 = vmatprep.subr.mxu0 0.0
    %54 = vmatpush1.msra.mxu0 %v14
    %55 = vmatprep.subr.mxu0 0.0
    %56 = vmatpush1.msra.mxu0 %v15
    %57 = vmatprep.subr.mxu0 0.0
    %58 = vmatpush1.msra.mxu0 0.0
    %59 = vmatprep.subr.mxu0 0.0
    %60 = vmatpush1.msra.mxu0 0.0
    %61 = vmatprep.subr.mxu0 0.0
    %62 = vmatpush1.msra.mxu0 0.0
    %63 = vmatprep.subr.mxu0 0.0
    %64 = vmatpush1.msra.mxu0 0.0
    %65 = vmatprep.subr.mxu0 0.0
    %66 = vmatpush1.msra.mxu0 0.0
    %67 = vmatprep.subr.mxu0 0.0
    %68 = vmatpush1.msra.mxu0 0.0
    %69 = vmatprep.subr.mxu0 0.0
    %70 = vmatpush1.msra.mxu0 0.0
    %71 = vmatprep.subr.mxu0 0.0
    %72 = vmatpush1.msra.mxu0 0.0
    %73 = vmatprep.subr.mxu0 0.0
    %74 = vmatpush1.msra.mxu0 0.0
    %75 = vmatprep.subr.mxu0 0.0
    %76 = vmatpush1.msra.mxu0 0.0
    %77 = vmatprep.subr.mxu0 0.0
    %78 = vmatpush1.msra.mxu0 0.0
    %79 = vmatprep.subr.mxu0 0.0
    %80 = vmatpush1.msra.mxu0 0.0
    %81 = vmatprep.subr.mxu0 0.0
    %82 = vmatpush1.msra.mxu0 0.0
    %83 = vmatprep.subr.mxu0 0.0
    %84 = vmatpush1.msra.mxu0 0.0
    %85 = vmatprep.subr.mxu0 0.0
    %86 = vmatpush1.msra.mxu0 0.0
    %87 = vmatprep.subr.mxu0 0.0
    %88 = vmatpush1.msra.mxu0 0.0
    %89 = vmatprep.subr.mxu0 0.0
    %90 = vmatpush1.msra.mxu0 0.0
    %91 = vmatprep.subr.mxu0 0.0
    %92 = vmatpush1.msra.mxu0 0.0
    %93 = vmatprep.subr.mxu0 0.0
    %94 = vmatpush1.msra.mxu0 0.0
    %95 = vmatprep.subr.mxu0 0.0
    %96 = vmatpush1.msra.mxu0 0.0
    %97 = vmatprep.subr.mxu0 0.0
    %98 = vmatpush1.msra.mxu0 0.0
    %99 = vmatprep.subr.mxu0 0.0
    %100 = vmatpush1.msra.mxu0 0.0
    %101 = vmatprep.subr.mxu0 0.0
    %102 = vmatpush1.msra.mxu0 0.0
    %103 = vmatprep.subr.mxu0 0.0
    %104 = vmatpush1.msra.mxu0 0.0
    %105 = vmatprep.subr.mxu0 0.0
    %106 = vmatpush1.msra.mxu0 0.0
    %107 = vmatprep.subr.mxu0 0.0
    %108 = vmatpush1.msra.mxu0 0.0
    %109 = vmatprep.subr.mxu0 0.0
    %110 = vmatpush1.msra.mxu0 0.0
    %111 = vmatprep.subr.mxu0 0.0
    %112 = vmatpush1.msra.mxu0 0.0
    %113 = vmatprep.mubr.f32.mxu0 0.0
    %114 = vmatmul.mubr.f32.gmra.mrb[0].mxu0 %v38
    %v115 = vpop.f32.mrb[0].mxu0
    %v116 = vadd.f32 0.0, %v115
    %v117 = vpop.f32.mrb[0].mxu0
    %118 = vmatprep.mubr.f32.mxu0 0.0
    %119 = vmatmul.mubr.f32.gmra.mrb[0].mxu0 %v41
    %v120 = vpop.f32.mrb[0].mxu0
    %v121 = vadd.f32 0.0, %v120
    %v122 = vpop.f32.mrb[0].mxu0
    %123 = vmatprep.mubr.f32.mxu0 0.0
    %124 = vmatmul.mubr.f32.gmra.mrb[0].mxu0 %v44
    %v125 = vpop.f32.mrb[0].mxu0
    %v126 = vadd.f32 0.0, %v125
    %v127 = vpop.f32.mrb[0].mxu0
    %128 = vmatprep.mubr.f32.mxu0 0.0
    %129 = vmatmul.mubr.f32.gmra.mrb[0].mxu0 %v47
    %v130 = vpop.f32.mrb[0].mxu0
    %v131 = vadd.f32 0.0, %v130
    %v132 = vpop.f32.mrb[0].mxu0
    %133 = vdwg.mxu0
    %v135 = vsel %vm36, %v20, 0
    %v138 = vsel %vm36, %v21, 0
    %v141 = vsel %vm36, %v22, 0
    %v144 = vsel %vm36, %v23, 0
    %146 = vmatprep.subr.mxu0 0.0
    %147 = vmatpush1.msra.mxu0 %v12
    %148 = vmatprep.subr.mxu0 0.0
    %149 = vmatpush1.msra.mxu0 %v13
    %150 = vmatprep.subr.mxu0 0.0
    %151 = vmatpush1.msra.mxu0 %v14
    %152 = vmatprep.subr.mxu0 0.0
    %153 = vmatpush1.msra.mxu0 %v15
    %154 = vmatprep.subr.mxu0 0.0
    %155 = vmatpush1.msra.mxu0 0.0
    %156 = vmatprep.subr.mxu0 0.0
    %157 = vmatpush1.msra.mxu0 0.0
    %158 = vmatprep.subr.mxu0 0.0
    %159 = vmatpush1.msra.mxu0 0.0
    %160 = vmatprep.subr.mxu0 0.0
    %161 = vmatpush1.msra.mxu0 0.0
    %162 = vmatprep.subr.mxu0 0.0
    %163 = vmatpush1.msra.mxu0 0.0
    %164 = vmatprep.subr.mxu0 0.0
    %165 = vmatpush1.msra.mxu0 0.0
    %166 = vmatprep.subr.mxu0 0.0
    %167 = vmatpush1.msra.mxu0 0.0
    %168 = vmatprep.subr.mxu0 0.0
    %169 = vmatpush1.msra.mxu0 0.0
    %170 = vmatprep.subr.mxu0 0.0
    %171 = vmatpush1.msra.mxu0 0.0
    %172 = vmatprep.subr.mxu0 0.0
    %173 = vmatpush1.msra.mxu0 0.0
    %174 = vmatprep.subr.mxu0 0.0
    %175 = vmatpush1.msra.mxu0 0.0
    %176 = vmatprep.subr.mxu0 0.0
    %177 = vmatpush1.msra.mxu0 0.0
    %178 = vmatprep.subr.mxu0 0.0
    %179 = vmatpush1.msra.mxu0 0.0
    %180 = vmatprep.subr.mxu0 0.0
    %181 = vmatpush1.msra.mxu0 0.0
    %182 = vmatprep.subr.mxu0 0.0
    %183 = vmatpush1.msra.mxu0 0.0
    %184 = vmatprep.subr.mxu0 0.0
    %185 = vmatpush1.msra.mxu0 0.0
    %186 = vmatprep.subr.mxu0 0.0
    %187 = vmatpush1.msra.mxu0 0.0
    %188 = vmatprep.subr.mxu0 0.0
    %189 = vmatpush1.msra.mxu0 0.0
    %190 = vmatprep.subr.mxu0 0.0
    %191 = vmatpush1.msra.mxu0 0.0
    %192 = vmatprep.subr.mxu0 0.0
    %193 = vmatpush1.msra.mxu0 0.0
    %194 = vmatprep.subr.mxu0 0.0
    %195 = vmatpush1.msra.mxu0 0.0
    %196 = vmatprep.subr.mxu0 0.0
    %197 = vmatpush1.msra.mxu0 0.0
    %198 = vmatprep.subr.mxu0 0.0
    %199 = vmatpush1.msra.mxu0 0.0
    %200 = vmatprep.subr.mxu0 0.0
    %201 = vmatpush1.msra.mxu0 0.0
    %202 = vmatprep.subr.mxu0 0.0
    %203 = vmatpush1.msra.mxu0 0.0
    %204 = vmatprep.subr.mxu0 0.0
    %205 = vmatpush1.msra.mxu0 0.0
    %206 = vmatprep.subr.mxu0 0.0
    %207 = vmatpush1.msra.mxu0 0.0
    %208 = vmatprep.subr.mxu0 0.0
    %209 = vmatpush1.msra.mxu0 0.0
    %210 = vmatprep.mubr.f32.mxu0 0.0
    %211 = vmatmul.mubr.f32.gmra.mrb[0].mxu0 %v135
    %v212 = vpop.f32.mrb[0].mxu0
    %v213 = vadd.f32 0.0, %v212
    %v214 = vpop.f32.mrb[0].mxu0
    %215 = vmatprep.mubr.f32.mxu0 0.0
    %216 = vmatmul.mubr.f32.gmra.mrb[0].mxu0 %v138
    %v217 = vpop.f32.mrb[0].mxu0
    %v218 = vadd.f32 0.0, %v217
    %v219 = vpop.f32.mrb[0].mxu0
    %220 = vmatprep.mubr.f32.mxu0 0.0
    %221 = vmatmul.mubr.f32.gmra.mrb[0].mxu0 %v141
    %v222 = vpop.f32.mrb[0].mxu0
    %v223 = vadd.f32 0.0, %v222
    %v224 = vpop.f32.mrb[0].mxu0
    %225 = vmatprep.mubr.f32.mxu0 0.0
    %226 = vmatmul.mubr.f32.gmra.mrb[0].mxu0 %v144
    %v227 = vpop.f32.mrb[0].mxu0
    %v228 = vadd.f32 0.0, %v227
    %v229 = vpop.f32.mrb[0].mxu0
    %230 = vdwg.mxu0
    %v231 = vld [vmem:[%s1] sm:$0x3f]
    %v232 = vld [vmem:[%s1 + $0x10] sm:$0x3f]
    %vm233 = vcmask 48128
    %v235 = vsel %vm233, %v12, 0
    %v238 = vsel %vm233, %v13, 0
    %v241 = vsel %vm233, %v14, 0
    %v244 = vsel %vm233, %v15, 0
    %vm246 = vcmask 1045504
    %v248 = vsel %vm246, %v232, 0
    %250 = vmatprep.subr.mxu0 0.0
    %251 = vmatpush1.msra.mxu0 %v248
    %252 = vmatprep.subr.mxu0 0.0
    %253 = vmatpush1.msra.mxu0 0.0
    %254 = vmatprep.subr.mxu0 0.0
    %255 = vmatpush1.msra.mxu0 0.0
    %256 = vmatprep.subr.mxu0 0.0
    %257 = vmatpush1.msra.mxu0 0.0
    %258 = vmatprep.subr.mxu0 0.0
    %259 = vmatpush1.msra.mxu0 0.0
    %260 = vmatprep.subr.mxu0 0.0
    %261 = vmatpush1.msra.mxu0 0.0
    %262 = vmatprep.subr.mxu0 0.0
    %263 = vmatpush1.msra.mxu0 0.0
    %264 = vmatprep.subr.mxu0 0.0
    %265 = vmatpush1.msra.mxu0 0.0
    %266 = vmatprep.subr.mxu0 0.0
    %267 = vmatpush1.msra.mxu0 0.0
    %268 = vmatprep.subr.mxu0 0.0
    %269 = vmatpush1.msra.mxu0 0.0
    %270 = vmatprep.subr.mxu0 0.0
    %271 = vmatpush1.msra.mxu0 0.0
    %272 = vmatprep.subr.mxu0 0.0
    %273 = vmatpush1.msra.mxu0 0.0
    %274 = vmatprep.subr.mxu0 0.0
    %275 = vmatpush1.msra.mxu0 0.0
    %276 = vmatprep.subr.mxu0 0.0
    %277 = vmatpush1.msra.mxu0 0.0
    %278 = vmatprep.subr.mxu0 0.0
    %279 = vmatpush1.msra.mxu0 0.0
    %280 = vmatprep.subr.mxu0 0.0
    %281 = vmatpush1.msra.mxu0 0.0
    %282 = vmatprep.subr.mxu0 0.0
    %283 = vmatpush1.msra.mxu0 0.0
    %284 = vmatprep.subr.mxu0 0.0
    %285 = vmatpush1.msra.mxu0 0.0
    %286 = vmatprep.subr.mxu0 0.0
    %287 = vmatpush1.msra.mxu0 0.0
    %288 = vmatprep.subr.mxu0 0.0
    %289 = vmatpush1.msra.mxu0 0.0
    %290 = vmatprep.subr.mxu0 0.0
    %291 = vmatpush1.msra.mxu0 0.0
    %292 = vmatprep.subr.mxu0 0.0
    %293 = vmatpush1.msra.mxu0 0.0
    %294 = vmatprep.subr.mxu0 0.0
    %295 = vmatpush1.msra.mxu0 0.0
    %296 = vmatprep.subr.mxu0 0.0
    %297 = vmatpush1.msra.mxu0 0.0
    %298 = vmatprep.subr.mxu0 0.0
    %299 = vmatpush1.msra.mxu0 0.0
    %300 = vmatprep.subr.mxu0 0.0
    %301 = vmatpush1.msra.mxu0 0.0
    %302 = vmatprep.subr.mxu0 0.0
    %303 = vmatpush1.msra.mxu0 0.0
    %304 = vmatprep.subr.mxu0 0.0
    %305 = vmatpush1.msra.mxu0 0.0
    %306 = vmatprep.subr.mxu0 0.0
    %307 = vmatpush1.msra.mxu0 0.0
    %308 = vmatprep.subr.mxu0 0.0
    %309 = vmatpush1.msra.mxu0 0.0
    %310 = vmatprep.subr.mxu0 0.0
    %311 = vmatpush1.msra.mxu0 0.0
    %312 = vmatprep.subr.mxu0 0.0
    %313 = vmatpush1.msra.mxu0 0.0
    %314 = vmatprep.mubr.f32.mxu0 0.0
    %315 = vmatmul.mubr.f32.gmra.mrb[0].mxu0 %v235
    %v316 = vpop.f32.mrb[0].mxu0
    %v317 = vadd.f32 0.0, %v316
    %v318 = vpop.f32.mrb[0].mxu0
    %319 = vmatprep.mubr.f32.mxu0 0.0
    %320 = vmatmul.mubr.f32.gmra.mrb[0].mxu0 %v238
    %v321 = vpop.f32.mrb[0].mxu0
    %v322 = vadd.f32 0.0, %v321
    %v323 = vpop.f32.mrb[0].mxu0
    %324 = vmatprep.mubr.f32.mxu0 0.0
    %325 = vmatmul.mubr.f32.gmra.mrb[0].mxu0 %v241
    %v326 = vpop.f32.mrb[0].mxu0
    %v327 = vadd.f32 0.0, %v326
    %v328 = vpop.f32.mrb[0].mxu0
    %329 = vmatprep.mubr.f32.mxu0 0.0
    %330 = vmatmul.mubr.f32.gmra.mrb[0].mxu0 %v244
    %v331 = vpop.f32.mrb[0].mxu0
    %v332 = vadd.f32 0.0, %v331
    %v333 = vpop.f32.mrb[0].mxu0
    %334 = vdwg.mxu0
    %v336 = vsel %vm233, %v116, 0
    %v339 = vsel %vm233, %v121, 0
    %v342 = vsel %vm233, %v126, 0
    %v345 = vsel %vm233, %v131, 0
    %v348 = vsel %vm246, %v231, 0
    %350 = vmatprep.subr.mxu0 0.0
    %351 = vmatpush1.msra.mxu0 %v348
    %352 = vmatprep.subr.mxu0 0.0
    %353 = vmatpush1.msra.mxu0 0.0
    %354 = vmatprep.subr.mxu0 0.0
    %355 = vmatpush1.msra.mxu0 0.0
    %356 = vmatprep.subr.mxu0 0.0
    %357 = vmatpush1.msra.mxu0 0.0
    %358 = vmatprep.subr.mxu0 0.0
    %359 = vmatpush1.msra.mxu0 0.0
    %360 = vmatprep.subr.mxu0 0.0
    %361 = vmatpush1.msra.mxu0 0.0
    %362 = vmatprep.subr.mxu0 0.0
    %363 = vmatpush1.msra.mxu0 0.0
    %364 = vmatprep.subr.mxu0 0.0
    %365 = vmatpush1.msra.mxu0 0.0
    %366 = vmatprep.subr.mxu0 0.0
    %367 = vmatpush1.msra.mxu0 0.0
    %368 = vmatprep.subr.mxu0 0.0
    %369 = vmatpush1.msra.mxu0 0.0
    %370 = vmatprep.subr.mxu0 0.0
    %371 = vmatpush1.msra.mxu0 0.0
    %372 = vmatprep.subr.mxu0 0.0
    %373 = vmatpush1.msra.mxu0 0.0
    %374 = vmatprep.subr.mxu0 0.0
    %375 = vmatpush1.msra.mxu0 0.0
    %376 = vmatprep.subr.mxu0 0.0
    %377 = vmatpush1.msra.mxu0 0.0
    %378 = vmatprep.subr.mxu0 0.0
    %379 = vmatpush1.msra.mxu0 0.0
    %380 = vmatprep.subr.mxu0 0.0
    %381 = vmatpush1.msra.mxu0 0.0
    %382 = vmatprep.subr.mxu0 0.0
    %383 = vmatpush1.msra.mxu0 0.0
    %384 = vmatprep.subr.mxu0 0.0
    %385 = vmatpush1.msra.mxu0 0.0
    %386 = vmatprep.subr.mxu0 0.0
    %387 = vmatpush1.msra.mxu0 0.0
    %388 = vmatprep.subr.mxu0 0.0
    %389 = vmatpush1.msra.mxu0 0.0
    %390 = vmatprep.subr.mxu0 0.0
    %391 = vmatpush1.msra.mxu0 0.0
    %392 = vmatprep.subr.mxu0 0.0
    %393 = vmatpush1.msra.mxu0 0.0
    %394 = vmatprep.subr.mxu0 0.0
    %395 = vmatpush1.msra.mxu0 0.0
    %396 = vmatprep.subr.mxu0 0.0
    %397 = vmatpush1.msra.mxu0 0.0
    %398 = vmatprep.subr.mxu0 0.0
    %399 = vmatpush1.msra.mxu0 0.0
    %400 = vmatprep.subr.mxu0 0.0
    %401 = vmatpush1.msra.mxu0 0.0
    %402 = vmatprep.subr.mxu0 0.0
    %403 = vmatpush1.msra.mxu0 0.0
    %404 = vmatprep.subr.mxu0 0.0
    %405 = vmatpush1.msra.mxu0 0.0
    %406 = vmatprep.subr.mxu0 0.0
    %407 = vmatpush1.msra.mxu0 0.0
    %408 = vmatprep.subr.mxu0 0.0
    %409 = vmatpush1.msra.mxu0 0.0
    %410 = vmatprep.subr.mxu0 0.0
    %411 = vmatpush1.msra.mxu0 0.0
    %412 = vmatprep.subr.mxu0 0.0
    %413 = vmatpush1.msra.mxu0 0.0
    %414 = vmatprep.mubr.f32.mxu0 0.0
    %415 = vmatmul.mubr.f32.gmra.mrb[0].mxu0 %v336
    %v416 = vpop.f32.mrb[0].mxu0
    %v417 = vadd.f32 %v317, %v416
    %v418 = vpop.f32.mrb[0].mxu0
    %419 = vmatprep.mubr.f32.mxu0 0.0
    %420 = vmatmul.mubr.f32.gmra.mrb[0].mxu0 %v339
    %v421 = vpop.f32.mrb[0].mxu0
    %v422 = vadd.f32 %v322, %v421
    %v423 = vpop.f32.mrb[0].mxu0
    %424 = vmatprep.mubr.f32.mxu0 0.0
    %425 = vmatmul.mubr.f32.gmra.mrb[0].mxu0 %v342
    %v426 = vpop.f32.mrb[0].mxu0
    %v427 = vadd.f32 %v327, %v426
    %v428 = vpop.f32.mrb[0].mxu0
    %429 = vmatprep.mubr.f32.mxu0 0.0
    %430 = vmatmul.mubr.f32.gmra.mrb[0].mxu0 %v345
    %v431 = vpop.f32.mrb[0].mxu0
    %v432 = vadd.f32 %v332, %v431
    %v433 = vpop.f32.mrb[0].mxu0
    %434 = vdwg.mxu0
    %v435 = vld [vmem:[%s1 + $0x20] sm:$0x3f]
    %v437 = vsel %vm233, %v213, 0
    %v440 = vsel %vm233, %v218, 0
    %v443 = vsel %vm233, %v223, 0
    %v446 = vsel %vm233, %v228, 0
    %v449 = vsel %vm246, %v435, 0
    %451 = vmatprep.subr.mxu0 0.0
    %452 = vmatpush1.msra.mxu0 %v449
    %453 = vmatprep.subr.mxu0 0.0
    %454 = vmatpush1.msra.mxu0 0.0
    %455 = vmatprep.subr.mxu0 0.0
    %456 = vmatpush1.msra.mxu0 0.0
    %457 = vmatprep.subr.mxu0 0.0
    %458 = vmatpush1.msra.mxu0 0.0
    %459 = vmatprep.subr.mxu0 0.0
    %460 = vmatpush1.msra.mxu0 0.0
    %461 = vmatprep.subr.mxu0 0.0
    %462 = vmatpush1.msra.mxu0 0.0
    %463 = vmatprep.subr.mxu0 0.0
    %464 = vmatpush1.msra.mxu0 0.0
    %465 = vmatprep.subr.mxu0 0.0
    %466 = vmatpush1.msra.mxu0 0.0
    %467 = vmatprep.subr.mxu0 0.0
    %468 = vmatpush1.msra.mxu0 0.0
    %469 = vmatprep.subr.mxu0 0.0
    %470 = vmatpush1.msra.mxu0 0.0
    %471 = vmatprep.subr.mxu0 0.0
    %472 = vmatpush1.msra.mxu0 0.0
    %473 = vmatprep.subr.mxu0 0.0
    %474 = vmatpush1.msra.mxu0 0.0
    %475 = vmatprep.subr.mxu0 0.0
    %476 = vmatpush1.msra.mxu0 0.0
    %477 = vmatprep.subr.mxu0 0.0
    %478 = vmatpush1.msra.mxu0 0.0
    %479 = vmatprep.subr.mxu0 0.0
    %480 = vmatpush1.msra.mxu0 0.0
    %481 = vmatprep.subr.mxu0 0.0
    %482 = vmatpush1.msra.mxu0 0.0
    %483 = vmatprep.subr.mxu0 0.0
    %484 = vmatpush1.msra.mxu0 0.0
    %485 = vmatprep.subr.mxu0 0.0
    %486 = vmatpush1.msra.mxu0 0.0
    %487 = vmatprep.subr.mxu0 0.0
    %488 = vmatpush1.msra.mxu0 0.0
    %489 = vmatprep.subr.mxu0 0.0
    %490 = vmatpush1.msra.mxu0 0.0
    %491 = vmatprep.subr.mxu0 0.0
    %492 = vmatpush1.msra.mxu0 0.0
    %493 = vmatprep.subr.mxu0 0.0
    %494 = vmatpush1.msra.mxu0 0.0
    %495 = vmatprep.subr.mxu0 0.0
    %496 = vmatpush1.msra.mxu0 0.0
    %497 = vmatprep.subr.mxu0 0.0
    %498 = vmatpush1.msra.mxu0 0.0
    %499 = vmatprep.subr.mxu0 0.0
    %500 = vmatpush1.msra.mxu0 0.0
    %501 = vmatprep.subr.mxu0 0.0
    %502 = vmatpush1.msra.mxu0 0.0
    %503 = vmatprep.subr.mxu0 0.0
    %504 = vmatpush1.msra.mxu0 0.0
    %505 = vmatprep.subr.mxu0 0.0
    %506 = vmatpush1.msra.mxu0 0.0
    %507 = vmatprep.subr.mxu0 0.0
    %508 = vmatpush1.msra.mxu0 0.0
    %509 = vmatprep.subr.mxu0 0.0
    %510 = vmatpush1.msra.mxu0 0.0
    %511 = vmatprep.subr.mxu0 0.0
    %512 = vmatpush1.msra.mxu0 0.0
    %513 = vmatprep.subr.mxu0 0.0
    %514 = vmatpush1.msra.mxu0 0.0
    %515 = vmatprep.mubr.f32.mxu0 0.0
    %516 = vmatmul.mubr.f32.gmra.mrb[0].mxu0 %v437
    %v517 = vpop.f32.mrb[0].mxu0
    %v518 = vadd.f32 0.0, %v517
    %v519 = vpop.f32.mrb[0].mxu0
    %520 = vmatprep.mubr.f32.mxu0 0.0
    %521 = vmatmul.mubr.f32.gmra.mrb[0].mxu0 %v440
    %v522 = vpop.f32.mrb[0].mxu0
    %v523 = vadd.f32 0.0, %v522
    %v524 = vpop.f32.mrb[0].mxu0
    %525 = vmatprep.mubr.f32.mxu0 0.0
    %526 = vmatmul.mubr.f32.gmra.mrb[0].mxu0 %v443
    %v527 = vpop.f32.mrb[0].mxu0
    %v528 = vadd.f32 0.0, %v527
    %v529 = vpop.f32.mrb[0].mxu0
    %530 = vmatprep.mubr.f32.mxu0 0.0
    %531 = vmatmul.mubr.f32.gmra.mrb[0].mxu0 %v446
    %v532 = vpop.f32.mrb[0].mxu0
    %v533 = vadd.f32 0.0, %v532
    %v534 = vpop.f32.mrb[0].mxu0
    %535 = vdwg.mxu0
    %v536 = vadd.f32 %v417, %v518
    %v537 = vadd.f32 %v422, %v523
    %v538 = vadd.f32 %v427, %v528
    %v539 = vadd.f32 %v432, %v533
    %v540 = vadd.f32 %v536, %v29
    %v541 = vadd.f32 %v537, %v29
    %v542 = vadd.f32 %v538, %v29
    %v543 = vadd.f32 %v539, %v29
    %v544 = vmax.f32 %v540, 0.0
    %v545 = vmax.f32 %v541, 0.0
    %v546 = vmax.f32 %v542, 0.0
    %v547 = vmax.f32 %v543, 0.0
    %548 = vmatprep.subr.mxu0 0.0
    %549 = vmatpush1.msra.mxu0 %v544
    %550 = vmatprep.subr.mxu0 0.0
    %551 = vmatpush1.msra.mxu0 %v545
    %552 = vmatprep.subr.mxu0 0.0
    %553 = vmatpush1.msra.mxu0 %v546
    %554 = vmatprep.subr.mxu0 0.0
    %555 = vmatpush1.msra.mxu0 %v547
    %556 = vmatprep.subr.mxu0 0.0
    %557 = vmatpush1.msra.mxu0 0.0
    %558 = vmatprep.subr.mxu0 0.0
    %559 = vmatpush1.msra.mxu0 0.0
    %560 = vmatprep.subr.mxu0 0.0
    %561 = vmatpush1.msra.mxu0 0.0
    %562 = vmatprep.subr.mxu0 0.0
    %563 = vmatpush1.msra.mxu0 0.0
    %564 = vmatprep.subr.mxu0 0.0
    %565 = vmatpush1.msra.mxu0 0.0
    %566 = vmatprep.subr.mxu0 0.0
    %567 = vmatpush1.msra.mxu0 0.0
    %568 = vmatprep.subr.mxu0 0.0
    %569 = vmatpush1.msra.mxu0 0.0
    %570 = vmatprep.subr.mxu0 0.0
    %571 = vmatpush1.msra.mxu0 0.0
    %572 = vmatprep.subr.mxu0 0.0
    %573 = vmatpush1.msra.mxu0 0.0
    %574 = vmatprep.subr.mxu0 0.0
    %575 = vmatpush1.msra.mxu0 0.0
    %576 = vmatprep.subr.mxu0 0.0
    %577 = vmatpush1.msra.mxu0 0.0
    %578 = vmatprep.subr.mxu0 0.0
    %579 = vmatpush1.msra.mxu0 0.0
    %580 = vmatprep.subr.mxu0 0.0
    %581 = vmatpush1.msra.mxu0 0.0
    %582 = vmatprep.subr.mxu0 0.0
    %583 = vmatpush1.msra.mxu0 0.0
    %584 = vmatprep.subr.mxu0 0.0
    %585 = vmatpush1.msra.mxu0 0.0
    %586 = vmatprep.subr.mxu0 0.0
    %587 = vmatpush1.msra.mxu0 0.0
    %588 = vmatprep.subr.mxu0 0.0
    %589 = vmatpush1.msra.mxu0 0.0
    %590 = vmatprep.subr.mxu0 0.0
    %591 = vmatpush1.msra.mxu0 0.0
    %592 = vmatprep.subr.mxu0 0.0
    %593 = vmatpush1.msra.mxu0 0.0
    %594 = vmatprep.subr.mxu0 0.0
    %595 = vmatpush1.msra.mxu0 0.0
    %596 = vmatprep.subr.mxu0 0.0
    %597 = vmatpush1.msra.mxu0 0.0
    %598 = vmatprep.subr.mxu0 0.0
    %599 = vmatpush1.msra.mxu0 0.0
    %600 = vmatprep.subr.mxu0 0.0
    %601 = vmatpush1.msra.mxu0 0.0
    %602 = vmatprep.subr.mxu0 0.0
    %603 = vmatpush1.msra.mxu0 0.0
    %604 = vmatprep.subr.mxu0 0.0
    %605 = vmatpush1.msra.mxu0 0.0
    %606 = vmatprep.subr.mxu0 0.0
    %607 = vmatpush1.msra.mxu0 0.0
    %608 = vmatprep.subr.mxu0 0.0
    %609 = vmatpush1.msra.mxu0 0.0
    %610 = vmatprep.subr.mxu0 0.0
    %611 = vmatpush1.msra.mxu0 0.0
    %612 = vmatprep.mubr.f32.mxu0 0.0
    %613 = vmatmul.mubr.f32.gmra.mrb[0].mxu0 %v38
    %v614 = vpop.f32.mrb[0].mxu0
    %v615 = vadd.f32 0.0, %v614
    %v616 = vpop.f32.mrb[0].mxu0
    %617 = vmatprep.mubr.f32.mxu0 0.0
    %618 = vmatmul.mubr.f32.gmra.mrb[0].mxu0 %v41
    %v619 = vpop.f32.mrb[0].mxu0
    %v620 = vadd.f32 0.0, %v619
    %v621 = vpop.f32.mrb[0].mxu0
    %622 = vmatprep.mubr.f32.mxu0 0.0
    %623 = vmatmul.mubr.f32.gmra.mrb[0].mxu0 %v44
    %v624 = vpop.f32.mrb[0].mxu0
    %v625 = vadd.f32 0.0, %v624
    %v626 = vpop.f32.mrb[0].mxu0
    %627 = vmatprep.mubr.f32.mxu0 0.0
    %628 = vmatmul.mubr.f32.gmra.mrb[0].mxu0 %v47
    %v629 = vpop.f32.mrb[0].mxu0
    %v630 = vadd.f32 0.0, %v629
    %v631 = vpop.f32.mrb[0].mxu0
    %632 = vdwg.mxu0
    %633 = vmatprep.subr.mxu0 0.0
    %634 = vmatpush1.msra.mxu0 %v544
    %635 = vmatprep.subr.mxu0 0.0
    %636 = vmatpush1.msra.mxu0 %v545
    %637 = vmatprep.subr.mxu0 0.0
    %638 = vmatpush1.msra.mxu0 %v546
    %639 = vmatprep.subr.mxu0 0.0
    %640 = vmatpush1.msra.mxu0 %v547
    %641 = vmatprep.subr.mxu0 0.0
    %642 = vmatpush1.msra.mxu0 0.0
    %643 = vmatprep.subr.mxu0 0.0
    %644 = vmatpush1.msra.mxu0 0.0
    %645 = vmatprep.subr.mxu0 0.0
    %646 = vmatpush1.msra.mxu0 0.0
    %647 = vmatprep.subr.mxu0 0.0
    %648 = vmatpush1.msra.mxu0 0.0
    %649 = vmatprep.subr.mxu0 0.0
    %650 = vmatpush1.msra.mxu0 0.0
    %651 = vmatprep.subr.mxu0 0.0
    %652 = vmatpush1.msra.mxu0 0.0
    %653 = vmatprep.subr.mxu0 0.0
    %654 = vmatpush1.msra.mxu0 0.0
    %655 = vmatprep.subr.mxu0 0.0
    %656 = vmatpush1.msra.mxu0 0.0
    %657 = vmatprep.subr.mxu0 0.0
    %658 = vmatpush1.msra.mxu0 0.0
    %659 = vmatprep.subr.mxu0 0.0
    %660 = vmatpush1.msra.mxu0 0.0
    %661 = vmatprep.subr.mxu0 0.0
    %662 = vmatpush1.msra.mxu0 0.0
    %663 = vmatprep.subr.mxu0 0.0
    %664 = vmatpush1.msra.mxu0 0.0
    %665 = vmatprep.subr.mxu0 0.0
    %666 = vmatpush1.msra.mxu0 0.0
    %667 = vmatprep.subr.mxu0 0.0
    %668 = vmatpush1.msra.mxu0 0.0
    %669 = vmatprep.subr.mxu0 0.0
    %670 = vmatpush1.msra.mxu0 0.0
    %671 = vmatprep.subr.mxu0 0.0
    %672 = vmatpush1.msra.mxu0 0.0
    %673 = vmatprep.subr.mxu0 0.0
    %674 = vmatpush1.msra.mxu0 0.0
    %675 = vmatprep.subr.mxu0 0.0
    %676 = vmatpush1.msra.mxu0 0.0
    %677 = vmatprep.subr.mxu0 0.0
    %678 = vmatpush1.msra.mxu0 0.0
    %679 = vmatprep.subr.mxu0 0.0
    %680 = vmatpush1.msra.mxu0 0.0
    %681 = vmatprep.subr.mxu0 0.0
    %682 = vmatpush1.msra.mxu0 0.0
    %683 = vmatprep.subr.mxu0 0.0
    %684 = vmatpush1.msra.mxu0 0.0
    %685 = vmatprep.subr.mxu0 0.0
    %686 = vmatpush1.msra.mxu0 0.0
    %687 = vmatprep.subr.mxu0 0.0
    %688 = vmatpush1.msra.mxu0 0.0
    %689 = vmatprep.subr.mxu0 0.0
    %690 = vmatpush1.msra.mxu0 0.0
    %691 = vmatprep.subr.mxu0 0.0
    %692 = vmatpush1.msra.mxu0 0.0
    %693 = vmatprep.subr.mxu0 0.0
    %694 = vmatpush1.msra.mxu0 0.0
    %695 = vmatprep.subr.mxu0 0.0
    %696 = vmatpush1.msra.mxu0 0.0
    %697 = vmatprep.mubr.f32.mxu0 0.0
    %698 = vmatmul.mubr.f32.gmra.mrb[0].mxu0 %v135
    %v699 = vpop.f32.mrb[0].mxu0
    %v700 = vadd.f32 0.0, %v699
    %v701 = vpop.f32.mrb[0].mxu0
    %702 = vmatprep.mubr.f32.mxu0 0.0
    %703 = vmatmul.mubr.f32.gmra.mrb[0].mxu0 %v138
    %v704 = vpop.f32.mrb[0].mxu0
    %v705 = vadd.f32 0.0, %v704
    %v706 = vpop.f32.mrb[0].mxu0
    %707 = vmatprep.mubr.f32.mxu0 0.0
    %708 = vmatmul.mubr.f32.gmra.mrb[0].mxu0 %v141
    %v709 = vpop.f32.mrb[0].mxu0
    %v710 = vadd.f32 0.0, %v709
    %v711 = vpop.f32.mrb[0].mxu0
    %712 = vmatprep.mubr.f32.mxu0 0.0
    %713 = vmatmul.mubr.f32.gmra.mrb[0].mxu0 %v144
    %v714 = vpop.f32.mrb[0].mxu0
    %v715 = vadd.f32 0.0, %v714
    %v716 = vpop.f32.mrb[0].mxu0
    %717 = vdwg.mxu0
    %v718 = vld [vmem:[%s1 + $0x30] sm:$0xff]
    %v719 = vld [vmem:[%s1 + $0x40] sm:$0xff]
    %v720 = vld [vmem:[%s1 + $0x50] sm:$0xff]
    %v721 = vld [vmem:[%s1 + $0x60] sm:$0xff]
    %vm722 = vcmask 130048
    %v724 = vsel %vm722, %v544, 0
    %v727 = vsel %vm722, %v545, 0
    %v730 = vsel %vm722, %v546, 0
    %v733 = vsel %vm722, %v547, 0
    %735 = vmatprep.subr.mxu0 0.0
    %736 = vmatpush1.msra.mxu0 %v720
    %737 = vmatprep.subr.mxu0 0.0
    %738 = vmatpush1.msra.mxu0 %v721
    %739 = vmatprep.subr.mxu0 0.0
    %740 = vmatpush1.msra.mxu0 0.0
    %741 = vmatprep.subr.mxu0 0.0
    %742 = vmatpush1.msra.mxu0 0.0
    %743 = vmatprep.subr.mxu0 0.0
    %744 = vmatpush1.msra.mxu0 0.0
    %745 = vmatprep.subr.mxu0 0.0
    %746 = vmatpush1.msra.mxu0 0.0
    %747 = vmatprep.subr.mxu0 0.0
    %748 = vmatpush1.msra.mxu0 0.0
    %749 = vmatprep.subr.mxu0 0.0
    %750 = vmatpush1.msra.mxu0 0.0
    %751 = vmatprep.subr.mxu0 0.0
    %752 = vmatpush1.msra.mxu0 0.0
    %753 = vmatprep.subr.mxu0 0.0
    %754 = vmatpush1.msra.mxu0 0.0
    %755 = vmatprep.subr.mxu0 0.0
    %756 = vmatpush1.msra.mxu0 0.0
    %757 = vmatprep.subr.mxu0 0.0
    %758 = vmatpush1.msra.mxu0 0.0
    %759 = vmatprep.subr.mxu0 0.0
    %760 = vmatpush1.msra.mxu0 0.0
    %761 = vmatprep.subr.mxu0 0.0
    %762 = vmatpush1.msra.mxu0 0.0
    %763 = vmatprep.subr.mxu0 0.0
    %764 = vmatpush1.msra.mxu0 0.0
    %765 = vmatprep.subr.mxu0 0.0
    %766 = vmatpush1.msra.mxu0 0.0
    %767 = vmatprep.subr.mxu0 0.0
    %768 = vmatpush1.msra.mxu0 0.0
    %769 = vmatprep.subr.mxu0 0.0
    %770 = vmatpush1.msra.mxu0 0.0
    %771 = vmatprep.subr.mxu0 0.0
    %772 = vmatpush1.msra.mxu0 0.0
    %773 = vmatprep.subr.mxu0 0.0
    %774 = vmatpush1.msra.mxu0 0.0
    %775 = vmatprep.subr.mxu0 0.0
    %776 = vmatpush1.msra.mxu0 0.0
    %777 = vmatprep.subr.mxu0 0.0
    %778 = vmatpush1.msra.mxu0 0.0
    %779 = vmatprep.subr.mxu0 0.0
    %780 = vmatpush1.msra.mxu0 0.0
    %781 = vmatprep.subr.mxu0 0.0
    %782 = vmatpush1.msra.mxu0 0.0
    %783 = vmatprep.subr.mxu0 0.0
    %784 = vmatpush1.msra.mxu0 0.0
    %785 = vmatprep.subr.mxu0 0.0
    %786 = vmatpush1.msra.mxu0 0.0
    %787 = vmatprep.subr.mxu0 0.0
    %788 = vmatpush1.msra.mxu0 0.0
    %789 = vmatprep.subr.mxu0 0.0
    %790 = vmatpush1.msra.mxu0 0.0
    %791 = vmatprep.subr.mxu0 0.0
    %792 = vmatpush1.msra.mxu0 0.0
    %793 = vmatprep.subr.mxu0 0.0
    %794 = vmatpush1.msra.mxu0 0.0
    %795 = vmatprep.subr.mxu0 0.0
    %796 = vmatpush1.msra.mxu0 0.0
    %797 = vmatprep.subr.mxu0 0.0
    %798 = vmatpush1.msra.mxu0 0.0
    %799 = vmatprep.mubr.f32.mxu0 0.0
    %800 = vmatmul.mubr.f32.gmra.mrb[0].mxu0 %v724
    %v801 = vpop.f32.mrb[0].mxu0
    %v802 = vadd.f32 0.0, %v801
    %v803 = vpop.f32.mrb[0].mxu0
    %804 = vmatprep.mubr.f32.mxu0 0.0
    %805 = vmatmul.mubr.f32.gmra.mrb[0].mxu0 %v727
    %v806 = vpop.f32.mrb[0].mxu0
    %v807 = vadd.f32 0.0, %v806
    %v808 = vpop.f32.mrb[0].mxu0
    %809 = vmatprep.mubr.f32.mxu0 0.0
    %810 = vmatmul.mubr.f32.gmra.mrb[0].mxu0 %v730
    %v811 = vpop.f32.mrb[0].mxu0
    %v812 = vadd.f32 0.0, %v811
    %v813 = vpop.f32.mrb[0].mxu0
    %814 = vmatprep.mubr.f32.mxu0 0.0
    %815 = vmatmul.mubr.f32.gmra.mrb[0].mxu0 %v733
    %v816 = vpop.f32.mrb[0].mxu0
    %v817 = vadd.f32 0.0, %v816
    %v818 = vpop.f32.mrb[0].mxu0
    %819 = vdwg.mxu0
    %v821 = vsel %vm722, %v615, 0
    %v824 = vsel %vm722, %v620, 0
    %v827 = vsel %vm722, %v625, 0
    %v830 = vsel %vm722, %v630, 0
    %832 = vmatprep.subr.mxu0 0.0
    %833 = vmatpush1.msra.mxu0 %v718
    %834 = vmatprep.subr.mxu0 0.0
    %835 = vmatpush1.msra.mxu0 %v719
    %836 = vmatprep.subr.mxu0 0.0
    %837 = vmatpush1.msra.mxu0 0.0
    %838 = vmatprep.subr.mxu0 0.0
    %839 = vmatpush1.msra.mxu0 0.0
    %840 = vmatprep.subr.mxu0 0.0
    %841 = vmatpush1.msra.mxu0 0.0
    %842 = vmatprep.subr.mxu0 0.0
    %843 = vmatpush1.msra.mxu0 0.0
    %844 = vmatprep.subr.mxu0 0.0
    %845 = vmatpush1.msra.mxu0 0.0
    %846 = vmatprep.subr.mxu0 0.0
    %847 = vmatpush1.msra.mxu0 0.0
    %848 = vmatprep.subr.mxu0 0.0
    %849 = vmatpush1.msra.mxu0 0.0
    %850 = vmatprep.subr.mxu0 0.0
    %851 = vmatpush1.msra.mxu0 0.0
    %852 = vmatprep.subr.mxu0 0.0
    %853 = vmatpush1.msra.mxu0 0.0
    %854 = vmatprep.subr.mxu0 0.0
    %855 = vmatpush1.msra.mxu0 0.0
    %856 = vmatprep.subr.mxu0 0.0
    %857 = vmatpush1.msra.mxu0 0.0
    %858 = vmatprep.subr.mxu0 0.0
    %859 = vmatpush1.msra.mxu0 0.0
    %860 = vmatprep.subr.mxu0 0.0
    %861 = vmatpush1.msra.mxu0 0.0
    %862 = vmatprep.subr.mxu0 0.0
    %863 = vmatpush1.msra.mxu0 0.0
    %864 = vmatprep.subr.mxu0 0.0
    %865 = vmatpush1.msra.mxu0 0.0
    %866 = vmatprep.subr.mxu0 0.0
    %867 = vmatpush1.msra.mxu0 0.0
    %868 = vmatprep.subr.mxu0 0.0
    %869 = vmatpush1.msra.mxu0 0.0
    %870 = vmatprep.subr.mxu0 0.0
    %871 = vmatpush1.msra.mxu0 0.0
    %872 = vmatprep.subr.mxu0 0.0
    %873 = vmatpush1.msra.mxu0 0.0
    %874 = vmatprep.subr.mxu0 0.0
    %875 = vmatpush1.msra.mxu0 0.0
    %876 = vmatprep.subr.mxu0 0.0
    %877 = vmatpush1.msra.mxu0 0.0
    %878 = vmatprep.subr.mxu0 0.0
    %879 = vmatpush1.msra.mxu0 0.0
    %880 = vmatprep.subr.mxu0 0.0
    %881 = vmatpush1.msra.mxu0 0.0
    %882 = vmatprep.subr.mxu0 0.0
    %883 = vmatpush1.msra.mxu0 0.0
    %884 = vmatprep.subr.mxu0 0.0
    %885 = vmatpush1.msra.mxu0 0.0
    %886 = vmatprep.subr.mxu0 0.0
    %887 = vmatpush1.msra.mxu0 0.0
    %888 = vmatprep.subr.mxu0 0.0
    %889 = vmatpush1.msra.mxu0 0.0
    %890 = vmatprep.subr.mxu0 0.0
    %891 = vmatpush1.msra.mxu0 0.0
    %892 = vmatprep.subr.mxu0 0.0
    %893 = vmatpush1.msra.mxu0 0.0
    %894 = vmatprep.subr.mxu0 0.0
    %895 = vmatpush1.msra.mxu0 0.0
    %896 = vmatprep.mubr.f32.mxu0 0.0
    %897 = vmatmul.mubr.f32.gmra.mrb[0].mxu0 %v821
    %v898 = vpop.f32.mrb[0].mxu0
    %v899 = vadd.f32 %v802, %v898
    %v900 = vpop.f32.mrb[0].mxu0
    %901 = vmatprep.mubr.f32.mxu0 0.0
    %902 = vmatmul.mubr.f32.gmra.mrb[0].mxu0 %v824
    %v903 = vpop.f32.mrb[0].mxu0
    %v904 = vadd.f32 %v807, %v903
    %v905 = vpop.f32.mrb[0].mxu0
    %906 = vmatprep.mubr.f32.mxu0 0.0
    %907 = vmatmul.mubr.f32.gmra.mrb[0].mxu0 %v827
    %v908 = vpop.f32.mrb[0].mxu0
    %v909 = vadd.f32 %v812, %v908
    %v910 = vpop.f32.mrb[0].mxu0
    %911 = vmatprep.mubr.f32.mxu0 0.0
    %912 = vmatmul.mubr.f32.gmra.mrb[0].mxu0 %v830
    %v913 = vpop.f32.mrb[0].mxu0
    %v914 = vadd.f32 %v817, %v913
    %v915 = vpop.f32.mrb[0].mxu0
    %916 = vdwg.mxu0
    %v917 = vld [vmem:[%s1 + $0x70] sm:$0xff]
    %v918 = vld [vmem:[%s1 + $0x80] sm:$0xff]
    %v920 = vsel %vm722, %v700, 0
    %v923 = vsel %vm722, %v705, 0
    %v926 = vsel %vm722, %v710, 0
    %v929 = vsel %vm722, %v715, 0
    %931 = vmatprep.subr.mxu0 0.0
    %932 = vmatpush1.msra.mxu0 %v917
    %933 = vmatprep.subr.mxu0 0.0
    %934 = vmatpush1.msra.mxu0 %v918
    %935 = vmatprep.subr.mxu0 0.0
    %936 = vmatpush1.msra.mxu0 0.0
    %937 = vmatprep.subr.mxu0 0.0
    %938 = vmatpush1.msra.mxu0 0.0
    %939 = vmatprep.subr.mxu0 0.0
    %940 = vmatpush1.msra.mxu0 0.0
    %941 = vmatprep.subr.mxu0 0.0
    %942 = vmatpush1.msra.mxu0 0.0
    %943 = vmatprep.subr.mxu0 0.0
    %944 = vmatpush1.msra.mxu0 0.0
    %945 = vmatprep.subr.mxu0 0.0
    %946 = vmatpush1.msra.mxu0 0.0
    %947 = vmatprep.subr.mxu0 0.0
    %948 = vmatpush1.msra.mxu0 0.0
    %949 = vmatprep.subr.mxu0 0.0
    %950 = vmatpush1.msra.mxu0 0.0
    %951 = vmatprep.subr.mxu0 0.0
    %952 = vmatpush1.msra.mxu0 0.0
    %953 = vmatprep.subr.mxu0 0.0
    %954 = vmatpush1.msra.mxu0 0.0
    %955 = vmatprep.subr.mxu0 0.0
    %956 = vmatpush1.msra.mxu0 0.0
    %957 = vmatprep.subr.mxu0 0.0
    %958 = vmatpush1.msra.mxu0 0.0
    %959 = vmatprep.subr.mxu0 0.0
    %960 = vmatpush1.msra.mxu0 0.0
    %961 = vmatprep.subr.mxu0 0.0
    %962 = vmatpush1.msra.mxu0 0.0
    %963 = vmatprep.subr.mxu0 0.0
    %964 = vmatpush1.msra.mxu0 0.0
    %965 = vmatprep.subr.mxu0 0.0
    %966 = vmatpush1.msra.mxu0 0.0
    %967 = vmatprep.subr.mxu0 0.0
    %968 = vmatpush1.msra.mxu0 0.0
    %969 = vmatprep.subr.mxu0 0.0
    %970 = vmatpush1.msra.mxu0 0.0
    %971 = vmatprep.subr.mxu0 0.0
    %972 = vmatpush1.msra.mxu0 0.0
    %973 = vmatprep.subr.mxu0 0.0
    %974 = vmatpush1.msra.mxu0 0.0
    %975 = vmatprep.subr.mxu0 0.0
    %976 = vmatpush1.msra.mxu0 0.0
    %977 = vmatprep.subr.mxu0 0.0
    %978 = vmatpush1.msra.mxu0 0.0
    %979 = vmatprep.subr.mxu0 0.0
    %980 = vmatpush1.msra.mxu0 0.0
    %981 = vmatprep.subr.mxu0 0.0
    %982 = vmatpush1.msra.mxu0 0.0
    %983 = vmatprep.subr.mxu0 0.0
    %984 = vmatpush1.msra.mxu0 0.0
    %985 = vmatprep.subr.mxu0 0.0
    %986 = vmatpush1.msra.mxu0 0.0
    %987 = vmatprep.subr.mxu0 0.0
    %988 = vmatpush1.msra.mxu0 0.0
    %989 = vmatprep.subr.mxu0 0.0
    %990 = vmatpush1.msra.mxu0 0.0
    %991 = vmatprep.subr.mxu0 0.0
    %992 = vmatpush1.msra.mxu0 0.0
    %993 = vmatprep.subr.mxu0 0.0
    %994 = vmatpush1.msra.mxu0 0.0
    %995 = vmatprep.mubr.f32.mxu0 0.0
    %996 = vmatmul.mubr.f32.gmra.mrb[0].mxu0 %v920
    %v997 = vpop.f32.mrb[0].mxu0
    %v998 = vadd.f32 0.0, %v997
    %v999 = vpop.f32.mrb[0].mxu0
    %1000 = vmatprep.mubr.f32.mxu0 0.0
    %1001 = vmatmul.mubr.f32.gmra.mrb[0].mxu0 %v923
    %v1002 = vpop.f32.mrb[0].mxu0
    %v1003 = vadd.f32 0.0, %v1002
    %v1004 = vpop.f32.mrb[0].mxu0
    %1005 = vmatprep.mubr.f32.mxu0 0.0
    %1006 = vmatmul.mubr.f32.gmra.mrb[0].mxu0 %v926
    %v1007 = vpop.f32.mrb[0].mxu0
    %v1008 = vadd.f32 0.0, %v1007
    %v1009 = vpop.f32.mrb[0].mxu0
    %1010 = vmatprep.mubr.f32.mxu0 0.0
    %1011 = vmatmul.mubr.f32.gmra.mrb[0].mxu0 %v929
    %v1012 = vpop.f32.mrb[0].mxu0
    %v1013 = vadd.f32 0.0, %v1012
    %v1014 = vpop.f32.mrb[0].mxu0
    %1015 = vdwg.mxu0
    %v1016 = vadd.f32 %v899, %v998
    %v1017 = vadd.f32 %v904, %v1003
    %v1018 = vadd.f32 %v909, %v1008
    %v1019 = vadd.f32 %v914, %v1013
    %v1020 = vadd.f32 %v1016, %v30
    %v1021 = vadd.f32 %v1017, %v30
    %v1022 = vadd.f32 %v1018, %v30
    %v1023 = vadd.f32 %v1019, %v30
    %vm1024 = vcmask 392192
    %v1025 = vsel %vm1024, %v1020, 0.0
    %v1026 = vsel %vm1024, %v1021, 0.0
    %v1027 = vadd.f32 %v1025, %v1026
    %v1028 = vsel %vm1024, %v1022, 0.0
    %v1029 = vadd.f32 %v1027, %v1028
    %v1030 = vsel %vm1024, %v1023, 0.0
    %v1031 = vadd.f32 %v1029, %v1030
    %v1032 = vrot.slane %v1031, 4
    %v1033 = vadd.f32 %v1031, %v1032
    %v1034 = vrot.slane %v1033, 2
    %v1035 = vadd.f32 %v1033, %v1034
    %v1036 = vrot.slane %v1035, 1
    %v1037 = vadd.f32 %v1035, %v1036
    %v1038 = vrcp.pop 32.0
    %v1039 = vmul.f32 %v1037, %v1038
    %v1040 = vsub.f32 %v1020, %v1039
    %v1041 = vsub.f32 %v1021, %v1039
    %v1042 = vsub.f32 %v1022, %v1039
    %v1043 = vsub.f32 %v1023, %v1039
    %v1044 = vmul.f32 %v1040, %v1040
    %v1045 = vmul.f32 %v1041, %v1041
    %v1046 = vmul.f32 %v1042, %v1042
    %v1047 = vmul.f32 %v1043, %v1043
    %v1048 = vsel %vm1024, %v1044, 0.0
    %v1049 = vsel %vm1024, %v1045, 0.0
    %v1050 = vadd.f32 %v1048, %v1049
    %v1051 = vsel %vm1024, %v1046, 0.0
    %v1052 = vadd.f32 %v1050, %v1051
    %v1053 = vsel %vm1024, %v1047, 0.0
    %v1054 = vadd.f32 %v1052, %v1053
    %v1055 = vrot.slane %v1054, 4
    %v1056 = vadd.f32 %v1054, %v1055
    %v1057 = vrot.slane %v1056, 2
    %v1058 = vadd.f32 %v1056, %v1057
    %v1059 = vrot.slane %v1058, 1
    %v1060 = vadd.f32 %v1058, %v1059
    %v1061 = vmul.f32 %v1060, %v1038
    %v1062 = vadd.f32 %v1061, 1e-05
    %v1063 = vrsqrt.pop %v1062
    %v1064 = vmul.f32 %v1040, %v1063
    %v1065 = vmul.f32 %v1041, %v1063
    %v1066 = vmul.f32 %v1042, %v1063
    %v1067 = vmul.f32 %v1043, %v1063
    %v1068 = vmul.f32 %v1064, %v31
    %v1069 = vmul.f32 %v1065, %v31
    %v1070 = vmul.f32 %v1066, %v31
    %v1071 = vmul.f32 %v1067, %v31
    %v1072 = vadd.f32 %v1068, %v32
    %v1073 = vadd.f32 %v1069, %v32
    %v1074 = vadd.f32 %v1070, %v32
    %v1075 = vadd.f32 %v1071, %v32
    %v1076 = vld [vmem:[%s1 + $0x90] sm:$0xff]
    %v1077 = vld [vmem:[%s1 + $0x98] sm:$0xff]
    %v1078 = vld [vmem:[%s1 + $0xa0] sm:$0xff]
    %v1079 = vld [vmem:[%s1 + $0xa8] sm:$0xff]
    %v1080 = vld [vmem:[%s1 + $0xb0] sm:$0xff]
    %v1081 = vld [vmem:[%s1 + $0xb8] sm:$0xff]
    %v1082 = vld [vmem:[%s1 + $0xc0] sm:$0xff]
    %v1083 = vld [vmem:[%s1 + $0xc8] sm:$0xff]
    %v1084 = vld [vmem:[%s1 + $0xd0] sm:$0xff]
    %v1085 = vld [vmem:[%s1 + $0xd8] sm:$0xff]
    %v1086 = vld [vmem:[%s1 + $0xe0] sm:$0xff]
    %v1087 = vld [vmem:[%s1 + $0xe8] sm:$0xff]
    %v1089 = vlaneseq
    %v1090 = vshrl.u32 %v1089, 7
    %v1091 = vsub.s32 0, %v1090
    %v1092 = vrot.slane %v34, %v1091
    %v1093 = vlaneseq
    %v1094 = vshrl.u32 %v1093, 7
    %v1095 = vsub.s32 1, %v1094
    %v1096 = vrot.slane %v34, %v1095
    %v1100 = vsel %vm1024, %v1072, 0
    %v1103 = vsel %vm1024, %v1073, 0
    %v1106 = vsel %vm1024, %v1074, 0
    %v1109 = vsel %vm1024, %v1075, 0
    %1111 = vmatprep.subr.mxu0 %v1077
    %1112 = vmatpush1.msra.mxu0 %v1076
    %1113 = vmatprep.subr.mxu0 %v1079
    %1114 = vmatpush1.msra.mxu0 %v1078
    %1115 = vmatprep.subr.mxu0 %v1081
    %1116 = vmatpush1.msra.mxu0 %v1080
    %1117 = vmatprep.subr.mxu0 %v1083
    %1118 = vmatpush1.msra.mxu0 %v1082
    %1119 = vmatprep.subr.mxu0 %v1085
    %1120 = vmatpush1.msra.mxu0 %v1084
    %1121 = vmatprep.subr.mxu0 %v1087
    %1122 = vmatpush1.msra.mxu0 %v1086
    %1123 = vmatprep.subr.mxu0 0.0
    %1124 = vmatpush1.msra.mxu0 0.0
    %1125 = vmatprep.subr.mxu0 0.0
    %1126 = vmatpush1.msra.mxu0 0.0
    %1127 = vmatprep.subr.mxu0 0.0
    %1128 = vmatpush1.msra.mxu0 0.0
    %1129 = vmatprep.subr.mxu0 0.0
    %1130 = vmatpush1.msra.mxu0 0.0
    %1131 = vmatprep.subr.mxu0 0.0
    %1132 = vmatpush1.msra.mxu0 0.0
    %1133 = vmatprep.subr.mxu0 0.0
    %1134 = vmatpush1.msra.mxu0 0.0
    %1135 = vmatprep.subr.mxu0 0.0
    %1136 = vmatpush1.msra.mxu0 0.0
    %1137 = vmatprep.subr.mxu0 0.0
    %1138 = vmatpush1.msra.mxu0 0.0
    %1139 = vmatprep.subr.mxu0 0.0
    %1140 = vmatpush1.msra.mxu0 0.0
    %1141 = vmatprep.subr.mxu0 0.0
    %1142 = vmatpush1.msra.mxu0 0.0
    %1143 = vmatprep.subr.mxu0 0.0
    %1144 = vmatpush1.msra.mxu0 0.0
    %1145 = vmatprep.subr.mxu0 0.0
    %1146 = vmatpush1.msra.mxu0 0.0
    %1147 = vmatprep.subr.mxu0 0.0
    %1148 = vmatpush1.msra.mxu0 0.0
    %1149 = vmatprep.subr.mxu0 0.0
    %1150 = vmatpush1.msra.mxu0 0.0
    %1151 = vmatprep.subr.mxu0 0.0
    %1152 = vmatpush1.msra.mxu0 0.0
    %1153 = vmatprep.subr.mxu0 0.0
    %1154 = vmatpush1.msra.mxu0 0.0
    %1155 = vmatprep.subr.mxu0 0.0
    %1156 = vmatpush1.msra.mxu0 0.0
    %1157 = vmatprep.subr.mxu0 0.0
    %1158 = vmatpush1.msra.mxu0 0.0
    %1159 = vmatprep.subr.mxu0 0.0
    %1160 = vmatpush1.msra.mxu0 0.0
    %1161 = vmatprep.subr.mxu0 0.0
    %1162 = vmatpush1.msra.mxu0 0.0
    %1163 = vmatprep.subr.mxu0 0.0
    %1164 = vmatpush1.msra.mxu0 0.0
    %1165 = vmatprep.subr.mxu0 0.0
    %1166 = vmatpush1.msra.mxu0 0.0
    %1167 = vmatprep.subr.mxu0 0.0
    %1168 = vmatpush1.msra.mxu0 0.0
    %1169 = vmatprep.subr.mxu0 0.0
    %1170 = vmatpush1.msra.mxu0 0.0
    %1171 = vmatprep.subr.mxu0 0.0
    %1172 = vmatpush1.msra.mxu0 0.0
    %1173 = vmatprep.subr.mxu0 0.0
    %1174 = vmatpush1.msra.mxu0 0.0
    %1175 = vmatprep.mubr.f32.mxu0 0.0
    %1176 = vmatmul.mubr.f32.gmra.mrb[0].mxu0 %v1100
    %v1177 = vpop.f32.mrb[0].mxu0
    %v1178 = vadd.f32 %v1092, %v1177
    %v1179 = vpop.f32.mrb[0].mxu0
    %v1180 = vadd.f32 %v1096, %v1179
    %1181 = vmatprep.mubr.f32.mxu0 0.0
    %1182 = vmatmul.mubr.f32.gmra.mrb[0].mxu0 %v1103
    %v1183 = vpop.f32.mrb[0].mxu0
    %v1184 = vadd.f32 %v1092, %v1183
    %v1185 = vpop.f32.mrb[0].mxu0
    %v1186 = vadd.f32 %v1096, %v1185
    %1187 = vmatprep.mubr.f32.mxu0 0.0
    %1188 = vmatmul.mubr.f32.gmra.mrb[0].mxu0 %v1106
    %v1189 = vpop.f32.mrb[0].mxu0
    %v1190 = vadd.f32 %v1092, %v1189
    %v1191 = vpop.f32.mrb[0].mxu0
    %v1192 = vadd.f32 %v1096, %v1191
    %1193 = vmatprep.mubr.f32.mxu0 0.0
    %1194 = vmatmul.mubr.f32.gmra.mrb[0].mxu0 %v1109
    %v1195 = vpop.f32.mrb[0].mxu0
    %v1196 = vadd.f32 %v1092, %v1195
    %v1197 = vpop.f32.mrb[0].mxu0
    %v1198 = vadd.f32 %v1096, %v1197
    %1199 = vdwg.mxu0
    %1204 = vrot.lane.b32.xlu0 %v1178, 80
    %v1205 = vpop.permute.xlu0 %1204
    %1206 = vrot.lane.b32.xlu0 %v1184, 80
    %v1207 = vpop.permute.xlu0 %1206
    %1208 = vrot.lane.b32.xlu0 %v1190, 80
    %v1209 = vpop.permute.xlu0 %1208
    %1210 = vrot.lane.b32.xlu0 %v1196, 80
    %v1211 = vpop.permute.xlu0 %1210
    %v1217 = vsel %vm36, %v24, 0
    %v1220 = vsel %vm36, %v25, 0
    %v1223 = vsel %vm36, %v26, 0
    %v1226 = vsel %vm36, %v27, 0
    %1228 = vmatprep.subr.mxu0 0.0
    %1229 = vmatpush1.msra.mxu0 %v1205
    %1230 = vmatprep.subr.mxu0 0.0
    %1231 = vmatpush1.msra.mxu0 %v1207
    %1232 = vmatprep.subr.mxu0 0.0
    %1233 = vmatpush1.msra.mxu0 %v1209
    %1234 = vmatprep.subr.mxu0 0.0
    %1235 = vmatpush1.msra.mxu0 %v1211
    %1236 = vmatprep.subr.mxu0 0.0
    %1237 = vmatpush1.msra.mxu0 0.0
    %1238 = vmatprep.subr.mxu0 0.0
    %1239 = vmatpush1.msra.mxu0 0.0
    %1240 = vmatprep.subr.mxu0 0.0
    %1241 = vmatpush1.msra.mxu0 0.0
    %1242 = vmatprep.subr.mxu0 0.0
    %1243 = vmatpush1.msra.mxu0 0.0
    %1244 = vmatprep.subr.mxu0 0.0
    %1245 = vmatpush1.msra.mxu0 0.0
    %1246 = vmatprep.subr.mxu0 0.0
    %1247 = vmatpush1.msra.mxu0 0.0
    %1248 = vmatprep.subr.mxu0 0.0
    %1249 = vmatpush1.msra.mxu0 0.0
    %1250 = vmatprep.subr.mxu0 0.0
    %1251 = vmatpush1.msra.mxu0 0.0
    %1252 = vmatprep.subr.mxu0 0.0
    %1253 = vmatpush1.msra.mxu0 0.0
    %1254 = vmatprep.subr.mxu0 0.0
    %1255 = vmatpush1.msra.mxu0 0.0
    %1256 = vmatprep.subr.mxu0 0.0
    %1257 = vmatpush1.msra.mxu0 0.0
    %1258 = vmatprep.subr.mxu0 0.0
    %1259 = vmatpush1.msra.mxu0 0.0
    %1260 = vmatprep.subr.mxu0 0.0
    %1261 = vmatpush1.msra.mxu0 0.0
    %1262 = vmatprep.subr.mxu0 0.0
    %1263 = vmatpush1.msra.mxu0 0.0
    %1264 = vmatprep.subr.mxu0 0.0
    %1265 = vmatpush1.msra.mxu0 0.0
    %1266 = vmatprep.subr.mxu0 0.0
    %1267 = vmatpush1.msra.mxu0 0.0
    %1268 = vmatprep.subr.mxu0 0.0
    %1269 = vmatpush1.msra.mxu0 0.0
    %1270 = vmatprep.subr.mxu0 0.0
    %1271 = vmatpush1.msra.mxu0 0.0
    %1272 = vmatprep.subr.mxu0 0.0
    %1273 = vmatpush1.msra.mxu0 0.0
    %1274 = vmatprep.subr.mxu0 0.0
    %1275 = vmatpush1.msra.mxu0 0.0
    %1276 = vmatprep.subr.mxu0 0.0
    %1277 = vmatpush1.msra.mxu0 0.0
    %1278 = vmatprep.subr.mxu0 0.0
    %1279 = vmatpush1.msra.mxu0 0.0
    %1280 = vmatprep.subr.mxu0 0.0
    %1281 = vmatpush1.msra.mxu0 0.0
    %1282 = vmatprep.subr.mxu0 0.0
    %1283 = vmatpush1.msra.mxu0 0.0
    %1284 = vmatprep.subr.mxu0 0.0
    %1285 = vmatpush1.msra.mxu0 0.0
    %1286 = vmatprep.subr.mxu0 0.0
    %1287 = vmatpush1.msra.mxu0 0.0
    %1288 = vmatprep.subr.mxu0 0.0
    %1289 = vmatpush1.msra.mxu0 0.0
    %1290 = vmatprep.subr.mxu0 0.0
    %1291 = vmatpush1.msra.mxu0 0.0
    %1292 = vmatprep.mubr.f32.mxu0 0.0
    %1293 = vmatmul.mubr.f32.gmra.mrb[0].mxu0 %v1217
    %v1294 = vpop.f32.mrb[0].mxu0
    %v1295 = vadd.f32 0.0, %v1294
    %v1296 = vpop.f32.mrb[0].mxu0
    %1297 = vmatprep.mubr.f32.mxu0 0.0
    %1298 = vmatmul.mubr.f32.gmra.mrb[0].mxu0 %v1220
    %v1299 = vpop.f32.mrb[0].mxu0
    %v1300 = vadd.f32 0.0, %v1299
    %v1301 = vpop.f32.mrb[0].mxu0
    %1302 = vmatprep.mubr.f32.mxu0 0.0
    %1303 = vmatmul.mubr.f32.gmra.mrb[0].mxu0 %v1223
    %v1304 = vpop.f32.mrb[0].mxu0
    %v1305 = vadd.f32 0.0, %v1304
    %v1306 = vpop.f32.mrb[0].mxu0
    %1307 = vmatprep.mubr.f32.mxu0 0.0
    %1308 = vmatmul.mubr.f32.gmra.mrb[0].mxu0 %v1226
    %v1309 = vpop.f32.mrb[0].mxu0
    %v1310 = vadd.f32 0.0, %v1309
    %v1311 = vpop.f32.mrb[0].mxu0
    %1312 = vdwg.mxu0
    %1317 = vrot.lane.b32.xlu0 %v1178, 32
    %v1318 = vpop.permute.xlu0 %1317
    %1319 = vrot.lane.b32.xlu0 %v1180, 32
    %v1320 = vpop.permute.xlu0 %1319
    %1321 = vrot.lane.b32.xlu0 %v1184, 32
    %v1322 = vpop.permute.xlu0 %1321
    %1323 = vrot.lane.b32.xlu0 %v1186, 32
    %v1324 = vpop.permute.xlu0 %1323
    %1325 = vrot.lane.b32.xlu0 %v1190, 32
    %v1326 = vpop.permute.xlu0 %1325
    %1327 = vrot.lane.b32.xlu0 %v1192, 32
    %v1328 = vpop.permute.xlu0 %1327
    %1329 = vrot.lane.b32.xlu0 %v1196, 32
    %v1330 = vpop.permute.xlu0 %1329
    %1331 = vrot.lane.b32.xlu0 %v1198, 32
    %v1332 = vpop.permute.xlu0 %1331
    %v1333 = vsel %vm36, %v1318, %v1320
    %v1334 = vsel %vm36, %v1322, %v1324
    %v1335 = vsel %vm36, %v1326, %v1328
    %v1336 = vsel %vm36, %v1330, %v1332
    %1341 = vmatprep.subr.mxu0 0.0
    %1342 = vmatpush1.msra.mxu0 %v1333
    %1343 = vmatprep.subr.mxu0 0.0
    %1344 = vmatpush1.msra.mxu0 %v1334
    %1345 = vmatprep.subr.mxu0 0.0
    %1346 = vmatpush1.msra.mxu0 %v1335
    %1347 = vmatprep.subr.mxu0 0.0
    %1348 = vmatpush1.msra.mxu0 %v1336
    %1349 = vmatprep.subr.mxu0 0.0
    %1350 = vmatpush1.msra.mxu0 0.0
    %1351 = vmatprep.subr.mxu0 0.0
    %1352 = vmatpush1.msra.mxu0 0.0
    %1353 = vmatprep.subr.mxu0 0.0
    %1354 = vmatpush1.msra.mxu0 0.0
    %1355 = vmatprep.subr.mxu0 0.0
    %1356 = vmatpush1.msra.mxu0 0.0
    %1357 = vmatprep.subr.mxu0 0.0
    %1358 = vmatpush1.msra.mxu0 0.0
    %1359 = vmatprep.subr.mxu0 0.0
    %1360 = vmatpush1.msra.mxu0 0.0
    %1361 = vmatprep.subr.mxu0 0.0
    %1362 = vmatpush1.msra.mxu0 0.0
    %1363 = vmatprep.subr.mxu0 0.0
    %1364 = vmatpush1.msra.mxu0 0.0
    %1365 = vmatprep.subr.mxu0 0.0
    %1366 = vmatpush1.msra.mxu0 0.0
    %1367 = vmatprep.subr.mxu0 0.0
    %1368 = vmatpush1.msra.mxu0 0.0
    %1369 = vmatprep.subr.mxu0 0.0
    %1370 = vmatpush1.msra.mxu0 0.0
    %1371 = vmatprep.subr.mxu0 0.0
    %1372 = vmatpush1.msra.mxu0 0.0
    %1373 = vmatprep.subr.mxu0 0.0
    %1374 = vmatpush1.msra.mxu0 0.0
    %1375 = vmatprep.subr.mxu0 0.0
    %1376 = vmatpush1.msra.mxu0 0.0
    %1377 = vmatprep.subr.mxu0 0.0
    %1378 = vmatpush1.msra.mxu0 0.0
    %1379 = vmatprep.subr.mxu0 0.0
    %1380 = vmatpush1.msra.mxu0 0.0
    %1381 = vmatprep.subr.mxu0 0.0
    %1382 = vmatpush1.msra.mxu0 0.0
    %1383 = vmatprep.subr.mxu0 0.0
    %1384 = vmatpush1.msra.mxu0 0.0
    %1385 = vmatprep.subr.mxu0 0.0
    %1386 = vmatpush1.msra.mxu0 0.0
    %1387 = vmatprep.subr.mxu0 0.0
    %1388 = vmatpush1.msra.mxu0 0.0
    %1389 = vmatprep.subr.mxu0 0.0
    %1390 = vmatpush1.msra.mxu0 0.0
    %1391 = vmatprep.subr.mxu0 0.0
    %1392 = vmatpush1.msra.mxu0 0.0
    %1393 = vmatprep.subr.mxu0 0.0
    %1394 = vmatpush1.msra.mxu0 0.0
    %1395 = vmatprep.subr.mxu0 0.0
    %1396 = vmatpush1.msra.mxu0 0.0
    %1397 = vmatprep.subr.mxu0 0.0
    %1398 = vmatpush1.msra.mxu0 0.0
    %1399 = vmatprep.subr.mxu0 0.0
    %1400 = vmatpush1.msra.mxu0 0.0
    %1401 = vmatprep.subr.mxu0 0.0
    %1402 = vmatpush1.msra.mxu0 0.0
    %1403 = vmatprep.subr.mxu0 0.0
    %1404 = vmatpush1.msra.mxu0 0.0
    %1405 = vmatprep.mubr.f32.mxu0 0.0
    %1406 = vmatmul.mubr.f32.gmra.mrb[0].mxu0 %v1217
    %v1407 = vpop.f32.mrb[0].mxu0
    %v1408 = vadd.f32 0.0, %v1407
    %v1409 = vpop.f32.mrb[0].mxu0
    %1410 = vmatprep.mubr.f32.mxu0 0.0
    %1411 = vmatmul.mubr.f32.gmra.mrb[0].mxu0 %v1220
    %v1412 = vpop.f32.mrb[0].mxu0
    %v1413 = vadd.f32 0.0, %v1412
    %v1414 = vpop.f32.mrb[0].mxu0
    %1415 = vmatprep.mubr.f32.mxu0 0.0
    %1416 = vmatmul.mubr.f32.gmra.mrb[0].mxu0 %v1223
    %v1417 = vpop.f32.mrb[0].mxu0
    %v1418 = vadd.f32 0.0, %v1417
    %v1419 = vpop.f32.mrb[0].mxu0
    %1420 = vmatprep.mubr.f32.mxu0 0.0
    %1421 = vmatmul.mubr.f32.gmra.mrb[0].mxu0 %v1226
    %v1422 = vpop.f32.mrb[0].mxu0
    %v1423 = vadd.f32 0.0, %v1422
    %v1424 = vpop.f32.mrb[0].mxu0
    %1425 = vdwg.mxu0
    %v1426 = vmul.f32 %v1178, %v1205
    %v1427 = vmul.f32 %v1184, %v1207
    %v1428 = vmul.f32 %v1190, %v1209
    %v1429 = vmul.f32 %v1196, %v1211
    %v1430 = vsel %vm1024, %v1426, 0.0
    %1431 = vadd.xlane.f32.xlu0 %v1430
    %v1432 = vpop.xlane.xlu0 %1431
    %v1433 = vsel %vm1024, %v1427, 0.0
    %1434 = vadd.xlane.f32.xlu0 %v1433
    %v1435 = vpop.xlane.xlu0 %1434
    %v1436 = vsel %vm1024, %v1428, 0.0
    %1437 = vadd.xlane.f32.xlu0 %v1436
    %v1438 = vpop.xlane.xlu0 %1437
    %v1439 = vsel %vm1024, %v1429, 0.0
    %1440 = vadd.xlane.f32.xlu0 %v1439
    %v1441 = vpop.xlane.xlu0 %1440
    %v1442 = vmul.f32 %v1178, %v1295
    %v1443 = vmul.f32 %v1184, %v1300
    %v1444 = vmul.f32 %v1190, %v1305
    %v1445 = vmul.f32 %v1196, %v1310
    %v1446 = vsel %vm1024, %v1442, 0.0
    %1447 = vadd.xlane.f32.xlu0 %v1446
    %v1448 = vpop.xlane.xlu0 %1447
    %v1449 = vsel %vm1024, %v1443, 0.0
    %1450 = vadd.xlane.f32.xlu0 %v1449
    %v1451 = vpop.xlane.xlu0 %1450
    %v1452 = vsel %vm1024, %v1444, 0.0
    %1453 = vadd.xlane.f32.xlu0 %v1452
    %v1454 = vpop.xlane.xlu0 %1453
    %v1455 = vsel %vm1024, %v1445, 0.0
    %1456 = vadd.xlane.f32.xlu0 %v1455
    %v1457 = vpop.xlane.xlu0 %1456
    %v1458 = vmax.f32 %v1432, %v1448
    %v1459 = vmax.f32 %v1435, %v1451
    %v1460 = vmax.f32 %v1438, %v1454
    %v1461 = vmax.f32 %v1441, %v1457
    %v1462 = vsub.f32 %v1432, %v1458
    %v1463 = vsub.f32 %v1435, %v1459
    %v1464 = vsub.f32 %v1438, %v1460
    %v1465 = vsub.f32 %v1441, %v1461
    %v1466 = vmul.f32 %v1462, 1.442695
    %v1467 = vpow.pop %v1466
    %v1468 = vmul.f32 %v1463, 1.442695
    %v1469 = vpow.pop %v1468
    %v1470 = vmul.f32 %v1464, 1.442695
    %v1471 = vpow.pop %v1470
    %v1472 = vmul.f32 %v1465, 1.442695
    %v1473 = vpow.pop %v1472
    %v1474 = vsub.f32 %v1448, %v1458
    %v1475 = vsub.f32 %v1451, %v1459
    %v1476 = vsub.f32 %v1454, %v1460
    %v1477 = vsub.f32 %v1457, %v1461
    %v1478 = vmul.f32 %v1474, 1.442695
    %v1479 = vpow.pop %v1478
    %v1480 = vmul.f32 %v1475, 1.442695
    %v1481 = vpow.pop %v1480
    %v1482 = vmul.f32 %v1476, 1.442695
    %v1483 = vpow.pop %v1482
    %v1484 = vmul.f32 %v1477, 1.442695
    %v1485 = vpow.pop %v1484
    %v1486 = vadd.f32 %v1467, %v1479
    %v1487 = vadd.f32 %v1469, %v1481
    %v1488 = vadd.f32 %v1471, %v1483
    %v1489 = vadd.f32 %v1473, %v1485
    %v1490 = vrcp.pop %v1486
    %v1491 = vrcp.pop %v1487
    %v1492 = vrcp.pop %v1488
    %v1493 = vrcp.pop %v1489
    %v1494 = vmul.f32 %v1467, %v1490
    %v1495 = vmul.f32 %v1469, %v1491
    %v1496 = vmul.f32 %v1471, %v1492
    %v1497 = vmul.f32 %v1473, %v1493
    %v1498 = vmul.f32 %v1494, %v1178
    %v1499 = vmul.f32 %v1494, %v1180
    %v1500 = vmul.f32 %v1495, %v1184
    %v1501 = vmul.f32 %v1495, %v1186
    %v1502 = vmul.f32 %v1496, %v1190
    %v1503 = vmul.f32 %v1496, %v1192
    %v1504 = vmul.f32 %v1497, %v1196
    %v1505 = vmul.f32 %v1497, %v1198
    %v1506 = vmul.f32 %v1479, %v1490
    %v1507 = vmul.f32 %v1481, %v1491
    %v1508 = vmul.f32 %v1483, %v1492
    %v1509 = vmul.f32 %v1485, %v1493
    %v1510 = vmul.f32 %v1506, %v1408
    %v1511 = vmul.f32 %v1507, %v1413
    %v1512 = vmul.f32 %v1508, %v1418
    %v1513 = vmul.f32 %v1509, %v1423
    %1518 = vrot.lane.b32.xlu0 %v1510, 96
    %v1519 = vpop.permute.xlu0 %1518
    %1520 = vrot.lane.b32.xlu0 %v1511, 96
    %v1521 = vpop.permute.xlu0 %1520
    %1522 = vrot.lane.b32.xlu0 %v1512, 96
    %v1523 = vpop.permute.xlu0 %1522
    %1524 = vrot.lane.b32.xlu0 %v1513, 96
    %v1525 = vpop.permute.xlu0 %1524
    %v1530 = vadd.f32 %v1498, %v1519
    %v1531 = vadd.f32 %v1499, %v1519
    %v1532 = vadd.f32 %v1500, %v1521
    %v1533 = vadd.f32 %v1501, %v1521
    %v1534 = vadd.f32 %v1502, %v1523
    %v1535 = vadd.f32 %v1503, %v1523
    %v1536 = vadd.f32 %v1504, %v1525
    %v1537 = vadd.f32 %v1505, %v1525
    %1546 = vrot.lane.b32.xlu0 %v1530, 32
    %v1547 = vpop.permute.xlu0 %1546
    %1548 = vrot.lane.b32.xlu0 %v1531, 32
    %v1549 = vpop.permute.xlu0 %1548
    %1550 = vrot.lane.b32.xlu0 %v1532, 32
    %v1551 = vpop.permute.xlu0 %1550
    %1552 = vrot.lane.b32.xlu0 %v1533, 32
    %v1553 = vpop.permute.xlu0 %1552
    %1554 = vrot.lane.b32.xlu0 %v1534, 32
    %v1555 = vpop.permute.xlu0 %1554
    %1556 = vrot.lane.b32.xlu0 %v1535, 32
    %v1557 = vpop.permute.xlu0 %1556
    %1558 = vrot.lane.b32.xlu0 %v1536, 32
    %v1559 = vpop.permute.xlu0 %1558
    %1560 = vrot.lane.b32.xlu0 %v1537, 32
    %v1561 = vpop.permute.xlu0 %1560
    %v1562 = vsel %vm36, %v1547, %v1549
    %v1563 = vsel %vm36, %v1551, %v1553
    %v1564 = vsel %vm36, %v1555, %v1557
    %v1565 = vsel %vm36, %v1559, %v1561
    %v1571 = vsel %vm36, %v28, 0
    %1573 = vmatprep.subr.mxu0 0.0
    %1574 = vmatpush1.msra.mxu0 %v1562
    %1575 = vmatprep.subr.mxu0 0.0
    %1576 = vmatpush1.msra.mxu0 %v1563
    %1577 = vmatprep.subr.mxu0 0.0
    %1578 = vmatpush1.msra.mxu0 %v1564
    %1579 = vmatprep.subr.mxu0 0.0
    %1580 = vmatpush1.msra.mxu0 %v1565
    %1581 = vmatprep.subr.mxu0 0.0
    %1582 = vmatpush1.msra.mxu0 0.0
    %1583 = vmatprep.subr.mxu0 0.0
    %1584 = vmatpush1.msra.mxu0 0.0
    %1585 = vmatprep.subr.mxu0 0.0
    %1586 = vmatpush1.msra.mxu0 0.0
    %1587 = vmatprep.subr.mxu0 0.0
    %1588 = vmatpush1.msra.mxu0 0.0
    %1589 = vmatprep.subr.mxu0 0.0
    %1590 = vmatpush1.msra.mxu0 0.0
    %1591 = vmatprep.subr.mxu0 0.0
    %1592 = vmatpush1.msra.mxu0 0.0
    %1593 = vmatprep.subr.mxu0 0.0
    %1594 = vmatpush1.msra.mxu0 0.0
    %1595 = vmatprep.subr.mxu0 0.0
    %1596 = vmatpush1.msra.mxu0 0.0
    %1597 = vmatprep.subr.mxu0 0.0
    %1598 = vmatpush1.msra.mxu0 0.0
    %1599 = vmatprep.subr.mxu0 0.0
    %1600 = vmatpush1.msra.mxu0 0.0
    %1601 = vmatprep.subr.mxu0 0.0
    %1602 = vmatpush1.msra.mxu0 0.0
    %1603 = vmatprep.subr.mxu0 0.0
    %1604 = vmatpush1.msra.mxu0 0.0
    %1605 = vmatprep.subr.mxu0 0.0
    %1606 = vmatpush1.msra.mxu0 0.0
    %1607 = vmatprep.subr.mxu0 0.0
    %1608 = vmatpush1.msra.mxu0 0.0
    %1609 = vmatprep.subr.mxu0 0.0
    %1610 = vmatpush1.msra.mxu0 0.0
    %1611 = vmatprep.subr.mxu0 0.0
    %1612 = vmatpush1.msra.mxu0 0.0
    %1613 = vmatprep.subr.mxu0 0.0
    %1614 = vmatpush1.msra.mxu0 0.0
    %1615 = vmatprep.subr.mxu0 0.0
    %1616 = vmatpush1.msra.mxu0 0.0
    %1617 = vmatprep.subr.mxu0 0.0
    %1618 = vmatpush1.msra.mxu0 0.0
    %1619 = vmatprep.subr.mxu0 0.0
    %1620 = vmatpush1.msra.mxu0 0.0
    %1621 = vmatprep.subr.mxu0 0.0
    %1622 = vmatpush1.msra.mxu0 0.0
    %1623 = vmatprep.subr.mxu0 0.0
    %1624 = vmatpush1.msra.mxu0 0.0
    %1625 = vmatprep.subr.mxu0 0.0
    %1626 = vmatpush1.msra.mxu0 0.0
    %1627 = vmatprep.subr.mxu0 0.0
    %1628 = vmatpush1.msra.mxu0 0.0
    %1629 = vmatprep.subr.mxu0 0.0
    %1630 = vmatpush1.msra.mxu0 0.0
    %1631 = vmatprep.subr.mxu0 0.0
    %1632 = vmatpush1.msra.mxu0 0.0
    %1633 = vmatprep.subr.mxu0 0.0
    %1634 = vmatpush1.msra.mxu0 0.0
    %1635 = vmatprep.subr.mxu0 0.0
    %1636 = vmatpush1.msra.mxu0 0.0
    %1637 = vmatprep.mubr.f32.mxu0 0.0
    %1638 = vmatmul.mubr.f32.gmra.mrb[0].mxu0 %v1571
    %v1639 = vpop.f32.mrb[0].mxu0
    %v1640 = vadd.f32 0.0, %v1639
    %v1641 = vpop.f32.mrb[0].mxu0
    %1642 = vdwg.mxu0
    %v1643 = vld [vmem:[%s1 + $0xf0] sm:$0xff]
    %v1644 = vld [vmem:[%s1 + $0x100] sm:$0xff]
    %v1645 = vld [vmem:[%s1 + $0x110] sm:$0xff]
    %v1646 = vld [vmem:[%s1 + $0x120] sm:$0xff]
    %v1647 = vld [vmem:[%s1 + $0x130] sm:$0xff]
    %v1648 = vld [vmem:[%s1 + $0x140] sm:$0xff]
    %v1650 = vsel %vm1024, %v1640, 0
    %1652 = vmatprep.subr.mxu0 0.0
    %1653 = vmatpush1.msra.mxu0 %v1643
    %1654 = vmatprep.subr.mxu0 0.0
    %1655 = vmatpush1.msra.mxu0 %v1644
    %1656 = vmatprep.subr.mxu0 0.0
    %1657 = vmatpush1.msra.mxu0 %v1645
    %1658 = vmatprep.subr.mxu0 0.0
    %1659 = vmatpush1.msra.mxu0 %v1646
    %1660 = vmatprep.subr.mxu0 0.0
    %1661 = vmatpush1.msra.mxu0 %v1647
    %1662 = vmatprep.subr.mxu0 0.0
    %1663 = vmatpush1.msra.mxu0 %v1648
    %1664 = vmatprep.subr.mxu0 0.0
    %1665 = vmatpush1.msra.mxu0 0.0
    %1666 = vmatprep.subr.mxu0 0.0
    %1667 = vmatpush1.msra.mxu0 0.0
    %1668 = vmatprep.subr.mxu0 0.0
    %1669 = vmatpush1.msra.mxu0 0.0
    %1670 = vmatprep.subr.mxu0 0.0
    %1671 = vmatpush1.msra.mxu0 0.0
    %1672 = vmatprep.subr.mxu0 0.0
    %1673 = vmatpush1.msra.mxu0 0.0
    %1674 = vmatprep.subr.mxu0 0.0
    %1675 = vmatpush1.msra.mxu0 0.0
    %1676 = vmatprep.subr.mxu0 0.0
    %1677 = vmatpush1.msra.mxu0 0.0
    %1678 = vmatprep.subr.mxu0 0.0
    %1679 = vmatpush1.msra.mxu0 0.0
    %1680 = vmatprep.subr.mxu0 0.0
    %1681 = vmatpush1.msra.mxu0 0.0
    %1682 = vmatprep.subr.mxu0 0.0
    %1683 = vmatpush1.msra.mxu0 0.0
    %1684 = vmatprep.subr.mxu0 0.0
    %1685 = vmatpush1.msra.mxu0 0.0
    %1686 = vmatprep.subr.mxu0 0.0
    %1687 = vmatpush1.msra.mxu0 0.0
    %1688 = vmatprep.subr.mxu0 0.0
    %1689 = vmatpush1.msra.mxu0 0.0
    %1690 = vmatprep.subr.mxu0 0.0
    %1691 = vmatpush1.msra.mxu0 0.0
    %1692 = vmatprep.subr.mxu0 0.0
    %1693 = vmatpush1.msra.mxu0 0.0
    %1694 = vmatprep.subr.mxu0 0.0
    %1695 = vmatpush1.msra.mxu0 0.0
    %1696 = vmatprep.subr.mxu0 0.0
    %1697 = vmatpush1.msra.mxu0 0.0
    %1698 = vmatprep.subr.mxu0 0.0
    %1699 = vmatpush1.msra.mxu0 0.0
    %1700 = vmatprep.subr.mxu0 0.0
    %1701 = vmatpush1.msra.mxu0 0.0
    %1702 = vmatprep.subr.mxu0 0.0
    %1703 = vmatpush1.msra.mxu0 0.0
    %1704 = vmatprep.subr.mxu0 0.0
    %1705 = vmatpush1.msra.mxu0 0.0
    %1706 = vmatprep.subr.mxu0 0.0
    %1707 = vmatpush1.msra.mxu0 0.0
    %1708 = vmatprep.subr.mxu0 0.0
    %1709 = vmatpush1.msra.mxu0 0.0
    %1710 = vmatprep.subr.mxu0 0.0
    %1711 = vmatpush1.msra.mxu0 0.0
    %1712 = vmatprep.subr.mxu0 0.0
    %1713 = vmatpush1.msra.mxu0 0.0
    %1714 = vmatprep.subr.mxu0 0.0
    %1715 = vmatpush1.msra.mxu0 0.0
    %1716 = vmatprep.mubr.f32.mxu0 0.0
    %1717 = vmatmul.mubr.f32.gmra.mrb[0].mxu0 %v1650
    %v1718 = vpop.f32.mrb[0].mxu0
    %v1719 = vadd.f32 %v35, %v1718
    %v1720 = vpop.f32.mrb[0].mxu0
    %1721 = vdwg.mxu0
    %vm1722 = vcmask 33792
    %1723 = vst.msk [vmem:[#allocation2] sm:$0x3] %vm1722, %v1719
    // Predicated region
    $region10: #{model3_forward.1} parent=1 // pred_check
      _
    $region11: #{model3_forward.1} parent=1 // pred_check_branch
      %1725 = sbr.rel (0) target = $region13
    $region12: #{model3_forward.1} parent=1 // pred_region
      %s1727 = ssub.s32 32, 32
      %1728 = vsyncadd [#allocation3], %s1727
      %s1730 = sshll.u32 [#allocation2], 4
      %s1731 = int_to_ptr.vmem [resolvable:$true] %s1730
      %1733 = dma.vmem_to_hbm [thread:$0]  %s1731, 32, %s2, [#allocation3]
    $region13: #{model3_forward.1} parent=1 // pred_fallthru
      _
    // Predicated region
    $region14: #{model3_forward.1} parent=1 // pred_check
      _
    $region15: #{model3_forward.1} parent=1 // pred_check_branch
      %1735 = sbr.rel (0) target = $region17
    $region16: #{model3_forward.1} parent=1 // pred_region
      %1736 = dma.done [#allocation3], 32
    $region17: #{model3_forward.1} parent=1 // pred_fallthru
      _
    %1737 = vsyncpa [#allocation3], 1

</llo_original>
